<compile_context>
chip_gen: v6e
topology: v6e:2x2x1
jax: 0.10.0
libtpu: 0.0.40
codegen_flags: <defaults>
</compile_context>

<pallas_src>
import functools

import jax
import jax.numpy as jnp
from jax.experimental import pallas as pl
from jax.experimental.pallas import tpu as pltpu


def _round_up(x, m):
    return (x + m - 1) // m * m


# ----------------------------------------------------------------------------
# Pure-JAX 3x3 "same" conv helper (used for the reference AND to precompute the
# constant-t channel response in the wrapper).  Weight layout: (3, 3, Cin, Cout).
# ----------------------------------------------------------------------------
def _conv3x3_ref(z, w, b):
    N, Cin, H, W = z.shape
    zp = jnp.pad(z, ((0, 0), (0, 0), (1, 1), (1, 1)))
    out = jnp.zeros((N, w.shape[-1], H, W), jnp.float32)
    for di in range(3):
        for dj in range(3):
            patch = zp[:, :, di:di + H, dj:dj + W]            # (N, Cin, H, W)
            wij = w[di, dj]                                    # (Cin, Cout)
            out = out + jnp.sum(
                patch[:, :, None] * wij[None, :, :, None, None], axis=1)
    return out + b.reshape(1, -1, 1, 1)


# ----------------------------------------------------------------------------
# Fused kernel: full RK4 integration of the two-ConcatConv ODE dynamics.
# ----------------------------------------------------------------------------
def _ode_rk4_kernel(x_ref, mask_ref, tr1_ref, tr2_ref, w1_ref, b1_ref,
                    w2_ref, b2_ref, o_ref, *, Wp, Lp, num_steps, dt):
    # x_ref   : (1, Cp, Lp) padded-flat state; zeros in halo/tail/pad channels
    # mask_ref: (1, Lp)     1.0 at interior pixels, 0.0 at halo / tail
    # tr*_ref : (Cp, Lp)    conv response of the constant-t channel (per conv)
    # w*_ref  : (Cp, 9*Cp)  im2col weight matrix (state channels only)
    # b*_ref  : (Cp, 1)     bias (zero for pad channels)
    # o_ref   : (1, Cp, Lp) state at t = T
    mask = mask_ref[...]
    tr1, tr2 = tr1_ref[...], tr2_ref[...]
    w1, b1 = w1_ref[...], b1_ref[...]
    w2, b2 = w2_ref[...], b2_ref[...]

    # 3x3 tap offsets in padded-flat coordinates (static Python ints).
    offsets = [(di - 1) * Wp + (dj - 1) for di in range(3) for dj in range(3)]

    def conv3x3(y, wmat, tresp, bias, t, relu):
        # y: (Cp, Lp) with zeros at halo/tail.  Shifted taps via lane rotation
        # (XLU slot); wraparound only reaches halo/tail lanes, re-masked below.
        taps = [y if off == 0 else pltpu.roll(y, shift=(-off) % Lp, axis=1)
                for off in offsets]
        stacked = jnp.concatenate(taps, axis=0)                 # (9*Cp, Lp)
        acc = jnp.dot(wmat, stacked, preferred_element_type=jnp.float32)
        acc = acc + t * tresp + bias
        if relu:
            acc = jnp.maximum(acc, 0.0)
        return acc * mask                                       # re-zero halo

    def f(t, y):
        # ConcatConv(t, .) -> ReLU -> ConcatConv(t, .), t-channel folded into tr*.
        h = conv3x3(y, w1, tr1, b1, t, relu=True)
        return conv3x3(h, w2, tr2, b2, t, relu=False)

    def rk4_step(i, y):
        t = i.astype(jnp.float32) * dt
        k1 = f(t, y)
        k2 = f(t + 0.5 * dt, y + (0.5 * dt) * k1)
        k3 = f(t + 0.5 * dt, y + (0.5 * dt) * k2)
        k4 = f(t + dt, y + dt * k3)
        return y + (dt / 6.0) * (k1 + 2.0 * k2 + 2.0 * k3 + k4)

    o_ref[0] = jax.lax.fori_loop(0, num_steps, rk4_step, x_ref[0])


# ----------------------------------------------------------------------------
# Wrapper: layout plumbing (NCHW <-> padded-flat lane-dense) + pallas_call.
# ----------------------------------------------------------------------------
def ode_block_forward(x_nchw, params, *, integration_time=1.0, num_steps=8):
    N, C, H, W = x_nchw.shape
    Hp, Wp = H + 2, W + 2
    Lraw = Hp * Wp
    Lp = _round_up(Lraw, 128)          # lane-dense padded-flat spatial length
    Cp = _round_up(C, 8)               # sublane-aligned channel count
    KK = 9 * Cp

    def to_padded_flat(img):           # (B, c, H, W) -> (B, Cp, Lp)
        B, c = img.shape[0], img.shape[1]
        p = jnp.pad(img.astype(jnp.float32),
                    ((0, 0), (0, Cp - c), (1, 1), (1, 1)))
        return jnp.pad(p.reshape(B, Cp, Lraw),
                       ((0, 0), (0, 0), (0, Lp - Lraw)))

    xflat = to_padded_flat(x_nchw)                               # (N, Cp, Lp)

    # Interior mask in padded-flat coordinates.
    idx = jnp.arange(Lp)
    r, c = idx // Wp, idx % Wp
    mask = (((idx < Lraw) & (r >= 1) & (r <= H) & (c >= 1) & (c <= W))
            .astype(jnp.float32).reshape(1, Lp))

    # Constant-t channel response: conv of an all-ones interior image with the
    # t-channel weight slice (zero-padded like the real conv), scaled by t
    # inside the kernel.  Precomputed once; removes per-stage concatenation.
    ones_img = jnp.ones((1, 1, H, W), jnp.float32)
    zb = jnp.zeros((C,), jnp.float32)
    tr1 = to_padded_flat(_conv3x3_ref(ones_img, params["w1"][:, :, :1, :], zb))[0]
    tr2 = to_padded_flat(_conv3x3_ref(ones_img, params["w2"][:, :, :1, :], zb))[0]

    # im2col weight matrices for the state channels, channel-padded to Cp.
    # Column order = (di, dj, ci) to match the in-kernel tap stacking order.
    def im2col(w):                     # (3, 3, C+1, C) -> (Cp, 9*Cp)
        wy = jnp.pad(w[:, :, 1:, :],
                     ((0, 0), (0, 0), (0, Cp - C), (0, Cp - C)))  # (3,3,Cp,Cp)
        return jnp.transpose(wy.reshape(KK, Cp))

    w1m, w2m = im2col(params["w1"]), im2col(params["w2"])
    b1 = jnp.pad(params["b1"], (0, Cp - C)).reshape(Cp, 1)
    b2 = jnp.pad(params["b2"], (0, Cp - C)).reshape(Cp, 1)

    dt = float(integration_time) / num_steps
    kernel = functools.partial(_ode_rk4_kernel, Wp=Wp, Lp=Lp,
                               num_steps=num_steps, dt=dt)
    const2 = lambda n: (0, 0)

    yflat = pl.pallas_call(
        kernel,
        out_shape=jax.ShapeDtypeStruct((N, Cp, Lp), jnp.float32),
        grid_spec=pltpu.PrefetchScalarGridSpec(
            num_scalar_prefetch=0,
            grid=(N,),
            in_specs=[
                pl.BlockSpec((1, Cp, Lp), lambda n: (n, 0, 0)),   # state
                pl.BlockSpec((1, Lp), const2),                    # interior mask
                pl.BlockSpec((Cp, Lp), const2),                   # t-response 1
                pl.BlockSpec((Cp, Lp), const2),                   # t-response 2
                pl.BlockSpec((Cp, KK), const2),                   # W1 (im2col)
                pl.BlockSpec((Cp, 1), const2),                    # b1
                pl.BlockSpec((Cp, KK), const2),                   # W2 (im2col)
                pl.BlockSpec((Cp, 1), const2),                    # b2
            ],
            out_specs=pl.BlockSpec((1, Cp, Lp), lambda n: (n, 0, 0)),
        ),
        compiler_params=pltpu.CompilerParams(
            dimension_semantics=("parallel",)),   # v7x: one batch elem per core
    )(xflat, mask, tr1, tr2, w1m, b1, w2m, b2)

    # Back to NCHW (drop channel padding, tail and halo).
    y = yflat[:, :C, :Lraw].reshape(N, C, Hp, Wp)[:, :, 1:H + 1, 1:W + 1]
    return y


# ----------------------------------------------------------------------------
# Pure-JAX reference (exact f32 VPU math, no MXU) for correctness checking.
# ----------------------------------------------------------------------------
def _odefunc_ref(t, y, params):
    N, C, H, W = y.shape
    tch = jnp.full((N, 1, H, W), t, jnp.float32)
    h = jnp.maximum(
        _conv3x3_ref(jnp.concatenate([tch, y], axis=1),
                     params["w1"], params["b1"]), 0.0)
    return _conv3x3_ref(jnp.concatenate([tch, h], axis=1),
                        params["w2"], params["b2"])


def ode_block_forward_ref(x, params, *, integration_time=1.0, num_steps=8):
    dt = float(integration_time) / num_steps
    y = x.astype(jnp.float32)
    for i in range(num_steps):
        t = i * dt
        k1 = _odefunc_ref(t, y, params)
        k2 = _odefunc_ref(t + 0.5 * dt, y + 0.5 * dt * k1, params)
        k3 = _odefunc_ref(t + 0.5 * dt, y + 0.5 * dt * k2, params)
        k4 = _odefunc_ref(t + dt, y + dt * k3, params)
        y = y + (dt / 6.0) * (k1 + 2.0 * k2 + 2.0 * k3 + k4)
    return y


# ----------------------------------------------------------------------------
# Parameter init (deterministic, synthetic; HWIO weight layout, t-channel first).
# ----------------------------------------------------------------------------
def init_params(key, dim):
    k1, k2 = jax.random.split(key)
    cin = dim + 1
    scale = 1.0 / jnp.sqrt(9.0 * cin)
    return {
        "w1": scale * jax.random.normal(k1, (3, 3, cin, dim), jnp.float32),
        "b1": jnp.zeros((dim,), jnp.float32),
        "w2": scale * jax.random.normal(k2, (3, 3, cin, dim), jnp.float32),
        "b2": jnp.zeros((dim,), jnp.float32),
    }


if __name__ == "__main__":
    key = jax.random.PRNGKey(0)
    kx, kp = jax.random.split(key)

    N, C, H, W = 2, 4, 16, 16
    x = jax.random.normal(kx, (N, C, H, W), jnp.float32)
    params = init_params(kp, C)

    fwd = jax.jit(functools.partial(ode_block_forward, num_steps=8))
    out = fwd(x, params)
    jax.block_until_ready(out)

    assert out.shape == (N, C, H, W), out.shape
    assert bool(jnp.all(jnp.isfinite(out)))

    # Structural correctness check vs. exact-f32 reference.  Loose tolerance
    # absorbs MXU default-precision vs. pure-VPU f32 drift over 64 conv calls;
    # a real layout/semantics bug would produce O(1) error.
    ref = jax.jit(functools.partial(ode_block_forward_ref, num_steps=8))(x, params)
    err = float(jnp.max(jnp.abs(out - ref)))
    assert err < 1e-1, f"max abs err vs reference: {err}"

    print("KERNEL_OK")
</pallas_src>

<mosaic_0001>
module attributes {stable_mosaic.version = 11 : i64} {
  func.func @_ode_rk4_kernel(%arg0: i32, %arg1: memref<1x8x384xf32, #tpu.memory_space<vmem>>, %arg2: memref<1x384xf32, #tpu.memory_space<vmem>>, %arg3: memref<8x384xf32, #tpu.memory_space<vmem>>, %arg4: memref<8x384xf32, #tpu.memory_space<vmem>>, %arg5: memref<8x72xf32, #tpu.memory_space<vmem>>, %arg6: memref<8x1xf32, #tpu.memory_space<vmem>>, %arg7: memref<8x72xf32, #tpu.memory_space<vmem>>, %arg8: memref<8x1xf32, #tpu.memory_space<vmem>>, %arg9: memref<1x8x384xf32, #tpu.memory_space<vmem>>) attributes {dimension_semantics = [#tpu.dimension_semantics<parallel>], iteration_bounds = array<i64: 2>, scalar_prefetch = 0 : i64, scratch_operands = 0 : i64, tpu.core_type = #tpu.core_type<tc>, window_params = [{transform_indices = @transform_0, window_bounds = array<i64: 1, 8, 384>}, {pipeline_mode = #tpu.pipeline_mode<synchronous>, transform_indices = @transform_1, window_bounds = array<i64: 1, 384>}, {pipeline_mode = #tpu.pipeline_mode<synchronous>, transform_indices = @transform_2, window_bounds = array<i64: 8, 384>}, {pipeline_mode = #tpu.pipeline_mode<synchronous>, transform_indices = @transform_3, window_bounds = array<i64: 8, 384>}, {pipeline_mode = #tpu.pipeline_mode<synchronous>, transform_indices = @transform_4, window_bounds = array<i64: 8, 72>}, {pipeline_mode = #tpu.pipeline_mode<synchronous>, transform_indices = @transform_5, window_bounds = array<i64: 8, 1>}, {pipeline_mode = #tpu.pipeline_mode<synchronous>, transform_indices = @transform_6, window_bounds = array<i64: 8, 72>}, {pipeline_mode = #tpu.pipeline_mode<synchronous>, transform_indices = @transform_7, window_bounds = array<i64: 8, 1>}, {transform_indices = @transform_8, window_bounds = array<i64: 1, 8, 384>}]} {
    %c0 = arith.constant 0 : index
    %c0_0 = arith.constant 0 : index
    %0 = vector.load %arg2[%c0, %c0_0] : memref<1x384xf32, #tpu.memory_space<vmem>>, vector<1x384xf32>
    %c0_1 = arith.constant 0 : index
    %c0_2 = arith.constant 0 : index
    %1 = vector.load %arg3[%c0_1, %c0_2] : memref<8x384xf32, #tpu.memory_space<vmem>>, vector<8x384xf32>
    %c0_3 = arith.constant 0 : index
    %c0_4 = arith.constant 0 : index
    %2 = vector.load %arg4[%c0_3, %c0_4] : memref<8x384xf32, #tpu.memory_space<vmem>>, vector<8x384xf32>
    %c0_5 = arith.constant 0 : index
    %c0_6 = arith.constant 0 : index
    %3 = vector.load %arg5[%c0_5, %c0_6] : memref<8x72xf32, #tpu.memory_space<vmem>>, vector<8x72xf32>
    %c0_7 = arith.constant 0 : index
    %c0_8 = arith.constant 0 : index
    %4 = vector.load %arg6[%c0_7, %c0_8] : memref<8x1xf32, #tpu.memory_space<vmem>>, vector<8x1xf32>
    %c0_9 = arith.constant 0 : index
    %c0_10 = arith.constant 0 : index
    %5 = vector.load %arg7[%c0_9, %c0_10] : memref<8x72xf32, #tpu.memory_space<vmem>>, vector<8x72xf32>
    %c0_11 = arith.constant 0 : index
    %c0_12 = arith.constant 0 : index
    %6 = vector.load %arg8[%c0_11, %c0_12] : memref<8x1xf32, #tpu.memory_space<vmem>>, vector<8x1xf32>
    %c0_13 = arith.constant 0 : index
    %c0_14 = arith.constant 0 : index
    %c0_15 = arith.constant 0 : index
    %7 = vector.load %arg1[%c0_13, %c0_14, %c0_15] : memref<1x8x384xf32, #tpu.memory_space<vmem>>, vector<1x8x384xf32>
    %8 = vector.shape_cast %7 : vector<1x8x384xf32> to vector<8x384xf32>
    %c0_i32 = arith.constant 0 : i32
    %c8_i32 = arith.constant 8 : i32
    %9 = arith.addi %c0_i32, %c8_i32 : i32
    %c1_i32 = arith.constant 1 : i32
    %10 = scf.for %arg10 = %c0_i32 to %9 step %c1_i32 iter_args(%arg11 = %8) -> (vector<8x384xf32>)  : i32 {
      %14 = arith.sitofp %arg10 : i32 to f32
      %cst = arith.constant 1.250000e-01 : f32
      %15 = arith.mulf %14, %cst : f32
      %c19_i32 = arith.constant 19 : i32
      %16 = tpu.dynamic_rotate %arg11 by %c19_i32 dim 1 : vector<8x384xf32>, i32 -> vector<8x384xf32>
      %c18_i32 = arith.constant 18 : i32
      %17 = tpu.dynamic_rotate %arg11 by %c18_i32 dim 1 : vector<8x384xf32>, i32 -> vector<8x384xf32>
      %c17_i32 = arith.constant 17 : i32
      %18 = tpu.dynamic_rotate %arg11 by %c17_i32 dim 1 : vector<8x384xf32>, i32 -> vector<8x384xf32>
      %c1_i32_20 = arith.constant 1 : i32
      %19 = tpu.dynamic_rotate %arg11 by %c1_i32_20 dim 1 : vector<8x384xf32>, i32 -> vector<8x384xf32>
      %c383_i32 = arith.constant 383 : i32
      %20 = tpu.dynamic_rotate %arg11 by %c383_i32 dim 1 : vector<8x384xf32>, i32 -> vector<8x384xf32>
      %c367_i32 = arith.constant 367 : i32
      %21 = tpu.dynamic_rotate %arg11 by %c367_i32 dim 1 : vector<8x384xf32>, i32 -> vector<8x384xf32>
      %c366_i32 = arith.constant 366 : i32
      %22 = tpu.dynamic_rotate %arg11 by %c366_i32 dim 1 : vector<8x384xf32>, i32 -> vector<8x384xf32>
      %c365_i32 = arith.constant 365 : i32
      %23 = tpu.dynamic_rotate %arg11 by %c365_i32 dim 1 : vector<8x384xf32>, i32 -> vector<8x384xf32>
      %24 = tpu.concatenate %16, %17, %18, %19, %arg11, %20, %21, %22, %23 in 0 : vector<8x384xf32>, vector<8x384xf32>, vector<8x384xf32>, vector<8x384xf32>, vector<8x384xf32>, vector<8x384xf32>, vector<8x384xf32>, vector<8x384xf32>, vector<8x384xf32> -> vector<72x384xf32>
      %cst_21 = arith.constant dense<0.000000e+00> : vector<8x384xf32>
      %25 = tpu.matmul %3, %24, %cst_21 {dimension_numbers = #tpu.dot_dimension_numbers<[1], [0], [0], [1], [0, 0, 1, 1], [], []>} : vector<8x72xf32>, vector<72x384xf32>, vector<8x384xf32> -> vector<8x384xf32>
      %26 = vector.broadcast %15 : f32 to vector<8x384xf32>
      %27 = arith.mulf %26, %1 : vector<8x384xf32>
      %28 = arith.addf %25, %27 : vector<8x384xf32>
      %29 = vector.broadcast %4 : vector<8x1xf32> to vector<8x384xf32>
      %30 = arith.addf %28, %29 : vector<8x384xf32>
      %cst_22 = arith.constant 0.000000e+00 : f32
      %31 = vector.broadcast %cst_22 : f32 to vector<8x384xf32>
      %32 = arith.maximumf %30, %31 : vector<8x384xf32>
      %33 = vector.broadcast %0 : vector<1x384xf32> to vector<8x384xf32>
      %34 = arith.mulf %32, %33 : vector<8x384xf32>
      %c19_i32_23 = arith.constant 19 : i32
      %35 = tpu.dynamic_rotate %34 by %c19_i32_23 dim 1 : vector<8x384xf32>, i32 -> vector<8x384xf32>
      %c18_i32_24 = arith.constant 18 : i32
      %36 = tpu.dynamic_rotate %34 by %c18_i32_24 dim 1 : vector<8x384xf32>, i32 -> vector<8x384xf32>
      %c17_i32_25 = arith.constant 17 : i32
      %37 = tpu.dynamic_rotate %34 by %c17_i32_25 dim 1 : vector<8x384xf32>, i32 -> vector<8x384xf32>
      %c1_i32_26 = arith.constant 1 : i32
      %38 = tpu.dynamic_rotate %34 by %c1_i32_26 dim 1 : vector<8x384xf32>, i32 -> vector<8x384xf32>
      %c383_i32_27 = arith.constant 383 : i32
      %39 = tpu.dynamic_rotate %34 by %c383_i32_27 dim 1 : vector<8x384xf32>, i32 -> vector<8x384xf32>
      %c367_i32_28 = arith.constant 367 : i32
      %40 = tpu.dynamic_rotate %34 by %c367_i32_28 dim 1 : vector<8x384xf32>, i32 -> vector<8x384xf32>
      %c366_i32_29 = arith.constant 366 : i32
      %41 = tpu.dynamic_rotate %34 by %c366_i32_29 dim 1 : vector<8x384xf32>, i32 -> vector<8x384xf32>
      %c365_i32_30 = arith.constant 365 : i32
      %42 = tpu.dynamic_rotate %34 by %c365_i32_30 dim 1 : vector<8x384xf32>, i32 -> vector<8x384xf32>
      %43 = tpu.concatenate %35, %36, %37, %38, %34, %39, %40, %41, %42 in 0 : vector<8x384xf32>, vector<8x384xf32>, vector<8x384xf32>, vector<8x384xf32>, vector<8x384xf32>, vector<8x384xf32>, vector<8x384xf32>, vector<8x384xf32>, vector<8x384xf32> -> vector<72x384xf32>
      %cst_31 = arith.constant dense<0.000000e+00> : vector<8x384xf32>
      %44 = tpu.matmul %5, %43, %cst_31 {dimension_numbers = #tpu.dot_dimension_numbers<[1], [0], [0], [1], [0, 0, 1, 1], [], []>} : vector<8x72xf32>, vector<72x384xf32>, vector<8x384xf32> -> vector<8x384xf32>
      %45 = vector.broadcast %15 : f32 to vector<8x384xf32>
      %46 = arith.mulf %45, %2 : vector<8x384xf32>
      %47 = arith.addf %44, %46 : vector<8x384xf32>
      %48 = vector.broadcast %6 : vector<8x1xf32> to vector<8x384xf32>
      %49 = arith.addf %47, %48 : vector<8x384xf32>
      %50 = vector.broadcast %0 : vector<1x384xf32> to vector<8x384xf32>
      %51 = arith.mulf %49, %50 : vector<8x384xf32>
      %cst_32 = arith.constant 6.250000e-02 : f32
      %52 = arith.addf %15, %cst_32 : f32
      %cst_33 = arith.constant 6.250000e-02 : f32
      %53 = vector.broadcast %cst_33 : f32 to vector<8x384xf32>
      %54 = arith.mulf %53, %51 : vector<8x384xf32>
      %55 = arith.addf %arg11, %54 : vector<8x384xf32>
      %c19_i32_34 = arith.constant 19 : i32
      %56 = tpu.dynamic_rotate %55 by %c19_i32_34 dim 1 : vector<8x384xf32>, i32 -> vector<8x384xf32>
      %c18_i32_35 = arith.constant 18 : i32
      %57 = tpu.dynamic_rotate %55 by %c18_i32_35 dim 1 : vector<8x384xf32>, i32 -> vector<8x384xf32>
      %c17_i32_36 = arith.constant 17 : i32
      %58 = tpu.dynamic_rotate %55 by %c17_i32_36 dim 1 : vector<8x384xf32>, i32 -> vector<8x384xf32>
      %c1_i32_37 = arith.constant 1 : i32
      %59 = tpu.dynamic_rotate %55 by %c1_i32_37 dim 1 : vector<8x384xf32>, i32 -> vector<8x384xf32>
      %c383_i32_38 = arith.constant 383 : i32
      %60 = tpu.dynamic_rotate %55 by %c383_i32_38 dim 1 : vector<8x384xf32>, i32 -> vector<8x384xf32>
      %c367_i32_39 = arith.constant 367 : i32
      %61 = tpu.dynamic_rotate %55 by %c367_i32_39 dim 1 : vector<8x384xf32>, i32 -> vector<8x384xf32>
      %c366_i32_40 = arith.constant 366 : i32
      %62 = tpu.dynamic_rotate %55 by %c366_i32_40 dim 1 : vector<8x384xf32>, i32 -> vector<8x384xf32>
      %c365_i32_41 = arith.constant 365 : i32
      %63 = tpu.dynamic_rotate %55 by %c365_i32_41 dim 1 : vector<8x384xf32>, i32 -> vector<8x384xf32>
      %64 = tpu.concatenate %56, %57, %58, %59, %55, %60, %61, %62, %63 in 0 : vector<8x384xf32>, vector<8x384xf32>, vector<8x384xf32>, vector<8x384xf32>, vector<8x384xf32>, vector<8x384xf32>, vector<8x384xf32>, vector<8x384xf32>, vector<8x384xf32> -> vector<72x384xf32>
      %cst_42 = arith.constant dense<0.000000e+00> : vector<8x384xf32>
      %65 = tpu.matmul %3, %64, %cst_42 {dimension_numbers = #tpu.dot_dimension_numbers<[1], [0], [0], [1], [0, 0, 1, 1], [], []>} : vector<8x72xf32>, vector<72x384xf32>, vector<8x384xf32> -> vector<8x384xf32>
      %66 = vector.broadcast %52 : f32 to vector<8x384xf32>
      %67 = arith.mulf %66, %1 : vector<8x384xf32>
      %68 = arith.addf %65, %67 : vector<8x384xf32>
      %69 = vector.broadcast %4 : vector<8x1xf32> to vector<8x384xf32>
      %70 = arith.addf %68, %69 : vector<8x384xf32>
      %cst_43 = arith.constant 0.000000e+00 : f32
      %71 = vector.broadcast %cst_43 : f32 to vector<8x384xf32>
      %72 = arith.maximumf %70, %71 : vector<8x384xf32>
      %73 = vector.broadcast %0 : vector<1x384xf32> to vector<8x384xf32>
      %74 = arith.mulf %72, %73 : vector<8x384xf32>
      %c19_i32_44 = arith.constant 19 : i32
      %75 = tpu.dynamic_rotate %74 by %c19_i32_44 dim 1 : vector<8x384xf32>, i32 -> vector<8x384xf32>
      %c18_i32_45 = arith.constant 18 : i32
      %76 = tpu.dynamic_rotate %74 by %c18_i32_45 dim 1 : vector<8x384xf32>, i32 -> vector<8x384xf32>
      %c17_i32_46 = arith.constant 17 : i32
      %77 = tpu.dynamic_rotate %74 by %c17_i32_46 dim 1 : vector<8x384xf32>, i32 -> vector<8x384xf32>
      %c1_i32_47 = arith.constant 1 : i32
      %78 = tpu.dynamic_rotate %74 by %c1_i32_47 dim 1 : vector<8x384xf32>, i32 -> vector<8x384xf32>
      %c383_i32_48 = arith.constant 383 : i32
      %79 = tpu.dynamic_rotate %74 by %c383_i32_48 dim 1 : vector<8x384xf32>, i32 -> vector<8x384xf32>
      %c367_i32_49 = arith.constant 367 : i32
      %80 = tpu.dynamic_rotate %74 by %c367_i32_49 dim 1 : vector<8x384xf32>, i32 -> vector<8x384xf32>
      %c366_i32_50 = arith.constant 366 : i32
      %81 = tpu.dynamic_rotate %74 by %c366_i32_50 dim 1 : vector<8x384xf32>, i32 -> vector<8x384xf32>
      %c365_i32_51 = arith.constant 365 : i32
      %82 = tpu.dynamic_rotate %74 by %c365_i32_51 dim 1 : vector<8x384xf32>, i32 -> vector<8x384xf32>
      %83 = tpu.concatenate %75, %76, %77, %78, %74, %79, %80, %81, %82 in 0 : vector<8x384xf32>, vector<8x384xf32>, vector<8x384xf32>, vector<8x384xf32>, vector<8x384xf32>, vector<8x384xf32>, vector<8x384xf32>, vector<8x384xf32>, vector<8x384xf32> -> vector<72x384xf32>
      %cst_52 = arith.constant dense<0.000000e+00> : vector<8x384xf32>
      %84 = tpu.matmul %5, %83, %cst_52 {dimension_numbers = #tpu.dot_dimension_numbers<[1], [0], [0], [1], [0, 0, 1, 1], [], []>} : vector<8x72xf32>, vector<72x384xf32>, vector<8x384xf32> -> vector<8x384xf32>
      %85 = vector.broadcast %52 : f32 to vector<8x384xf32>
      %86 = arith.mulf %85, %2 : vector<8x384xf32>
      %87 = arith.addf %84, %86 : vector<8x384xf32>
      %88 = vector.broadcast %6 : vector<8x1xf32> to vector<8x384xf32>
      %89 = arith.addf %87, %88 : vector<8x384xf32>
      %90 = vector.broadcast %0 : vector<1x384xf32> to vector<8x384xf32>
      %91 = arith.mulf %89, %90 : vector<8x384xf32>
      %cst_53 = arith.constant 6.250000e-02 : f32
      %92 = arith.addf %15, %cst_53 : f32
      %cst_54 = arith.constant 6.250000e-02 : f32
      %93 = vector.broadcast %cst_54 : f32 to vector<8x384xf32>
      %94 = arith.mulf %93, %91 : vector<8x384xf32>
      %95 = arith.addf %arg11, %94 : vector<8x384xf32>
      %c19_i32_55 = arith.constant 19 : i32
      %96 = tpu.dynamic_rotate %95 by %c19_i32_55 dim 1 : vector<8x384xf32>, i32 -> vector<8x384xf32>
      %c18_i32_56 = arith.constant 18 : i32
      %97 = tpu.dynamic_rotate %95 by %c18_i32_56 dim 1 : vector<8x384xf32>, i32 -> vector<8x384xf32>
      %c17_i32_57 = arith.constant 17 : i32
      %98 = tpu.dynamic_rotate %95 by %c17_i32_57 dim 1 : vector<8x384xf32>, i32 -> vector<8x384xf32>
      %c1_i32_58 = arith.constant 1 : i32
      %99 = tpu.dynamic_rotate %95 by %c1_i32_58 dim 1 : vector<8x384xf32>, i32 -> vector<8x384xf32>
      %c383_i32_59 = arith.constant 383 : i32
      %100 = tpu.dynamic_rotate %95 by %c383_i32_59 dim 1 : vector<8x384xf32>, i32 -> vector<8x384xf32>
      %c367_i32_60 = arith.constant 367 : i32
      %101 = tpu.dynamic_rotate %95 by %c367_i32_60 dim 1 : vector<8x384xf32>, i32 -> vector<8x384xf32>
      %c366_i32_61 = arith.constant 366 : i32
      %102 = tpu.dynamic_rotate %95 by %c366_i32_61 dim 1 : vector<8x384xf32>, i32 -> vector<8x384xf32>
      %c365_i32_62 = arith.constant 365 : i32
      %103 = tpu.dynamic_rotate %95 by %c365_i32_62 dim 1 : vector<8x384xf32>, i32 -> vector<8x384xf32>
      %104 = tpu.concatenate %96, %97, %98, %99, %95, %100, %101, %102, %103 in 0 : vector<8x384xf32>, vector<8x384xf32>, vector<8x384xf32>, vector<8x384xf32>, vector<8x384xf32>, vector<8x384xf32>, vector<8x384xf32>, vector<8x384xf32>, vector<8x384xf32> -> vector<72x384xf32>
      %cst_63 = arith.constant dense<0.000000e+00> : vector<8x384xf32>
      %105 = tpu.matmul %3, %104, %cst_63 {dimension_numbers = #tpu.dot_dimension_numbers<[1], [0], [0], [1], [0, 0, 1, 1], [], []>} : vector<8x72xf32>, vector<72x384xf32>, vector<8x384xf32> -> vector<8x384xf32>
      %106 = vector.broadcast %92 : f32 to vector<8x384xf32>
      %107 = arith.mulf %106, %1 : vector<8x384xf32>
      %108 = arith.addf %105, %107 : vector<8x384xf32>
      %109 = vector.broadcast %4 : vector<8x1xf32> to vector<8x384xf32>
      %110 = arith.addf %108, %109 : vector<8x384xf32>
      %cst_64 = arith.constant 0.000000e+00 : f32
      %111 = vector.broadcast %cst_64 : f32 to vector<8x384xf32>
      %112 = arith.maximumf %110, %111 : vector<8x384xf32>
      %113 = vector.broadcast %0 : vector<1x384xf32> to vector<8x384xf32>
      %114 = arith.mulf %112, %113 : vector<8x384xf32>
      %c19_i32_65 = arith.constant 19 : i32
      %115 = tpu.dynamic_rotate %114 by %c19_i32_65 dim 1 : vector<8x384xf32>, i32 -> vector<8x384xf32>
      %c18_i32_66 = arith.constant 18 : i32
      %116 = tpu.dynamic_rotate %114 by %c18_i32_66 dim 1 : vector<8x384xf32>, i32 -> vector<8x384xf32>
      %c17_i32_67 = arith.constant 17 : i32
      %117 = tpu.dynamic_rotate %114 by %c17_i32_67 dim 1 : vector<8x384xf32>, i32 -> vector<8x384xf32>
      %c1_i32_68 = arith.constant 1 : i32
      %118 = tpu.dynamic_rotate %114 by %c1_i32_68 dim 1 : vector<8x384xf32>, i32 -> vector<8x384xf32>
      %c383_i32_69 = arith.constant 383 : i32
      %119 = tpu.dynamic_rotate %114 by %c383_i32_69 dim 1 : vector<8x384xf32>, i32 -> vector<8x384xf32>
      %c367_i32_70 = arith.constant 367 : i32
      %120 = tpu.dynamic_rotate %114 by %c367_i32_70 dim 1 : vector<8x384xf32>, i32 -> vector<8x384xf32>
      %c366_i32_71 = arith.constant 366 : i32
      %121 = tpu.dynamic_rotate %114 by %c366_i32_71 dim 1 : vector<8x384xf32>, i32 -> vector<8x384xf32>
      %c365_i32_72 = arith.constant 365 : i32
      %122 = tpu.dynamic_rotate %114 by %c365_i32_72 dim 1 : vector<8x384xf32>, i32 -> vector<8x384xf32>
      %123 = tpu.concatenate %115, %116, %117, %118, %114, %119, %120, %121, %122 in 0 : vector<8x384xf32>, vector<8x384xf32>, vector<8x384xf32>, vector<8x384xf32>, vector<8x384xf32>, vector<8x384xf32>, vector<8x384xf32>, vector<8x384xf32>, vector<8x384xf32> -> vector<72x384xf32>
      %cst_73 = arith.constant dense<0.000000e+00> : vector<8x384xf32>
      %124 = tpu.matmul %5, %123, %cst_73 {dimension_numbers = #tpu.dot_dimension_numbers<[1], [0], [0], [1], [0, 0, 1, 1], [], []>} : vector<8x72xf32>, vector<72x384xf32>, vector<8x384xf32> -> vector<8x384xf32>
      %125 = vector.broadcast %92 : f32 to vector<8x384xf32>
      %126 = arith.mulf %125, %2 : vector<8x384xf32>
      %127 = arith.addf %124, %126 : vector<8x384xf32>
      %128 = vector.broadcast %6 : vector<8x1xf32> to vector<8x384xf32>
      %129 = arith.addf %127, %128 : vector<8x384xf32>
      %130 = vector.broadcast %0 : vector<1x384xf32> to vector<8x384xf32>
      %131 = arith.mulf %129, %130 : vector<8x384xf32>
      %cst_74 = arith.constant 1.250000e-01 : f32
      %132 = arith.addf %15, %cst_74 : f32
      %cst_75 = arith.constant 1.250000e-01 : f32
      %133 = vector.broadcast %cst_75 : f32 to vector<8x384xf32>
      %134 = arith.mulf %133, %131 : vector<8x384xf32>
      %135 = arith.addf %arg11, %134 : vector<8x384xf32>
      %c19_i32_76 = arith.constant 19 : i32
      %136 = tpu.dynamic_rotate %135 by %c19_i32_76 dim 1 : vector<8x384xf32>, i32 -> vector<8x384xf32>
      %c18_i32_77 = arith.constant 18 : i32
      %137 = tpu.dynamic_rotate %135 by %c18_i32_77 dim 1 : vector<8x384xf32>, i32 -> vector<8x384xf32>
      %c17_i32_78 = arith.constant 17 : i32
      %138 = tpu.dynamic_rotate %135 by %c17_i32_78 dim 1 : vector<8x384xf32>, i32 -> vector<8x384xf32>
      %c1_i32_79 = arith.constant 1 : i32
      %139 = tpu.dynamic_rotate %135 by %c1_i32_79 dim 1 : vector<8x384xf32>, i32 -> vector<8x384xf32>
      %c383_i32_80 = arith.constant 383 : i32
      %140 = tpu.dynamic_rotate %135 by %c383_i32_80 dim 1 : vector<8x384xf32>, i32 -> vector<8x384xf32>
      %c367_i32_81 = arith.constant 367 : i32
      %141 = tpu.dynamic_rotate %135 by %c367_i32_81 dim 1 : vector<8x384xf32>, i32 -> vector<8x384xf32>
      %c366_i32_82 = arith.constant 366 : i32
      %142 = tpu.dynamic_rotate %135 by %c366_i32_82 dim 1 : vector<8x384xf32>, i32 -> vector<8x384xf32>
      %c365_i32_83 = arith.constant 365 : i32
      %143 = tpu.dynamic_rotate %135 by %c365_i32_83 dim 1 : vector<8x384xf32>, i32 -> vector<8x384xf32>
      %144 = tpu.concatenate %136, %137, %138, %139, %135, %140, %141, %142, %143 in 0 : vector<8x384xf32>, vector<8x384xf32>, vector<8x384xf32>, vector<8x384xf32>, vector<8x384xf32>, vector<8x384xf32>, vector<8x384xf32>, vector<8x384xf32>, vector<8x384xf32> -> vector<72x384xf32>
      %cst_84 = arith.constant dense<0.000000e+00> : vector<8x384xf32>
      %145 = tpu.matmul %3, %144, %cst_84 {dimension_numbers = #tpu.dot_dimension_numbers<[1], [0], [0], [1], [0, 0, 1, 1], [], []>} : vector<8x72xf32>, vector<72x384xf32>, vector<8x384xf32> -> vector<8x384xf32>
      %146 = vector.broadcast %132 : f32 to vector<8x384xf32>
      %147 = arith.mulf %146, %1 : vector<8x384xf32>
      %148 = arith.addf %145, %147 : vector<8x384xf32>
      %149 = vector.broadcast %4 : vector<8x1xf32> to vector<8x384xf32>
      %150 = arith.addf %148, %149 : vector<8x384xf32>
      %cst_85 = arith.constant 0.000000e+00 : f32
      %151 = vector.broadcast %cst_85 : f32 to vector<8x384xf32>
      %152 = arith.maximumf %150, %151 : vector<8x384xf32>
      %153 = vector.broadcast %0 : vector<1x384xf32> to vector<8x384xf32>
      %154 = arith.mulf %152, %153 : vector<8x384xf32>
      %c19_i32_86 = arith.constant 19 : i32
      %155 = tpu.dynamic_rotate %154 by %c19_i32_86 dim 1 : vector<8x384xf32>, i32 -> vector<8x384xf32>
      %c18_i32_87 = arith.constant 18 : i32
      %156 = tpu.dynamic_rotate %154 by %c18_i32_87 dim 1 : vector<8x384xf32>, i32 -> vector<8x384xf32>
      %c17_i32_88 = arith.constant 17 : i32
      %157 = tpu.dynamic_rotate %154 by %c17_i32_88 dim 1 : vector<8x384xf32>, i32 -> vector<8x384xf32>
      %c1_i32_89 = arith.constant 1 : i32
      %158 = tpu.dynamic_rotate %154 by %c1_i32_89 dim 1 : vector<8x384xf32>, i32 -> vector<8x384xf32>
      %c383_i32_90 = arith.constant 383 : i32
      %159 = tpu.dynamic_rotate %154 by %c383_i32_90 dim 1 : vector<8x384xf32>, i32 -> vector<8x384xf32>
      %c367_i32_91 = arith.constant 367 : i32
      %160 = tpu.dynamic_rotate %154 by %c367_i32_91 dim 1 : vector<8x384xf32>, i32 -> vector<8x384xf32>
      %c366_i32_92 = arith.constant 366 : i32
      %161 = tpu.dynamic_rotate %154 by %c366_i32_92 dim 1 : vector<8x384xf32>, i32 -> vector<8x384xf32>
      %c365_i32_93 = arith.constant 365 : i32
      %162 = tpu.dynamic_rotate %154 by %c365_i32_93 dim 1 : vector<8x384xf32>, i32 -> vector<8x384xf32>
      %163 = tpu.concatenate %155, %156, %157, %158, %154, %159, %160, %161, %162 in 0 : vector<8x384xf32>, vector<8x384xf32>, vector<8x384xf32>, vector<8x384xf32>, vector<8x384xf32>, vector<8x384xf32>, vector<8x384xf32>, vector<8x384xf32>, vector<8x384xf32> -> vector<72x384xf32>
      %cst_94 = arith.constant dense<0.000000e+00> : vector<8x384xf32>
      %164 = tpu.matmul %5, %163, %cst_94 {dimension_numbers = #tpu.dot_dimension_numbers<[1], [0], [0], [1], [0, 0, 1, 1], [], []>} : vector<8x72xf32>, vector<72x384xf32>, vector<8x384xf32> -> vector<8x384xf32>
      %165 = vector.broadcast %132 : f32 to vector<8x384xf32>
      %166 = arith.mulf %165, %2 : vector<8x384xf32>
      %167 = arith.addf %164, %166 : vector<8x384xf32>
      %168 = vector.broadcast %6 : vector<8x1xf32> to vector<8x384xf32>
      %169 = arith.addf %167, %168 : vector<8x384xf32>
      %170 = vector.broadcast %0 : vector<1x384xf32> to vector<8x384xf32>
      %171 = arith.mulf %169, %170 : vector<8x384xf32>
      %cst_95 = arith.constant 2.000000e+00 : f32
      %172 = vector.broadcast %cst_95 : f32 to vector<8x384xf32>
      %173 = arith.mulf %172, %91 : vector<8x384xf32>
      %174 = arith.addf %51, %173 : vector<8x384xf32>
      %cst_96 = arith.constant 2.000000e+00 : f32
      %175 = vector.broadcast %cst_96 : f32 to vector<8x384xf32>
      %176 = arith.mulf %175, %131 : vector<8x384xf32>
      %177 = arith.addf %174, %176 : vector<8x384xf32>
      %178 = arith.addf %177, %171 : vector<8x384xf32>
      %cst_97 = arith.constant 0.020833334 : f32
      %179 = vector.broadcast %cst_97 : f32 to vector<8x384xf32>
      %180 = arith.mulf %179, %178 : vector<8x384xf32>
      %181 = arith.addf %arg11, %180 : vector<8x384xf32>
      scf.yield %181 : vector<8x384xf32>
    }
    %c8_i32_16 = arith.constant 8 : i32
    %c0_17 = arith.constant 0 : index
    %c0_18 = arith.constant 0 : index
    %c0_19 = arith.constant 0 : index
    %11 = vector.load %arg9[%c0_17, %c0_18, %c0_19] : memref<1x8x384xf32, #tpu.memory_space<vmem>>, vector<1x8x384xf32>
    %12 = vector.shape_cast %11 : vector<1x8x384xf32> to vector<8x384xf32>
    %13 = vector.shape_cast %10 : vector<8x384xf32> to vector<1x8x384xf32>
    tpu.vector_store %arg9[%c0_17, %c0_18, %c0_19], %13 {strides = array<i32>} : memref<1x8x384xf32, #tpu.memory_space<vmem>>, vector<1x8x384xf32>,
    return
  }
  func.func @transform_0(%arg0: i32) -> (i32, i32, i32) {
    %c0_i32 = arith.constant 0 : i32
    %c0_i32_0 = arith.constant 0 : i32
    %c0_i32_1 = arith.constant 0 : i32
    return %arg0, %c0_i32, %c0_i32_0 : i32, i32, i32
  }
  func.func @transform_1(%arg0: i32) -> (i32, i32) {
    %c0_i32 = arith.constant 0 : i32
    %c0_i32_0 = arith.constant 0 : i32
    %c0_i32_1 = arith.constant 0 : i32
    return %c0_i32, %c0_i32_0 : i32, i32
  }
  func.func @transform_2(%arg0: i32) -> (i32, i32) {
    %c0_i32 = arith.constant 0 : i32
    %c0_i32_0 = arith.constant 0 : i32
    %c0_i32_1 = arith.constant 0 : i32
    return %c0_i32, %c0_i32_0 : i32, i32
  }
  func.func @transform_3(%arg0: i32) -> (i32, i32) {
    %c0_i32 = arith.constant 0 : i32
    %c0_i32_0 = arith.constant 0 : i32
    %c0_i32_1 = arith.constant 0 : i32
    return %c0_i32, %c0_i32_0 : i32, i32
  }
  func.func @transform_4(%arg0: i32) -> (i32, i32) {
    %c0_i32 = arith.constant 0 : i32
    %c0_i32_0 = arith.constant 0 : i32
    %c0_i32_1 = arith.constant 0 : i32
    return %c0_i32, %c0_i32_0 : i32, i32
  }
  func.func @transform_5(%arg0: i32) -> (i32, i32) {
    %c0_i32 = arith.constant 0 : i32
    %c0_i32_0 = arith.constant 0 : i32
    %c0_i32_1 = arith.constant 0 : i32
    return %c0_i32, %c0_i32_0 : i32, i32
  }
  func.func @transform_6(%arg0: i32) -> (i32, i32) {
    %c0_i32 = arith.constant 0 : i32
    %c0_i32_0 = arith.constant 0 : i32
    %c0_i32_1 = arith.constant 0 : i32
    return %c0_i32, %c0_i32_0 : i32, i32
  }
  func.func @transform_7(%arg0: i32) -> (i32, i32) {
    %c0_i32 = arith.constant 0 : i32
    %c0_i32_0 = arith.constant 0 : i32
    %c0_i32_1 = arith.constant 0 : i32
    return %c0_i32, %c0_i32_0 : i32, i32
  }
  func.func @transform_8(%arg0: i32) -> (i32, i32, i32) {
    %c0_i32 = arith.constant 0 : i32
    %c0_i32_0 = arith.constant 0 : i32
    %c0_i32_1 = arith.constant 0 : i32
    return %arg0, %c0_i32, %c0_i32_0 : i32, i32, i32
  }
}

</mosaic_0001>

<llo_original>
// kernel: ode_block_forward.1
$region0: #{ode_block_forward.1}
  #allocation0 [shape = 'u32[]', space=smem, size = 0x4, offset = 0x4, fixed_abs, tag = 'smem constant byte address 0x4 - core index']
  #allocation1 [shape = 'u32[144,128]{1,0:T(1,128)}', space=vmem, size = 0x12000, scoped, tag = 'internal scratch']
  %s0 = inlined_call_operand.vmem [shape: f32[2,8,384], index: 0, kind: input, shape index: {}]
  %s1 = inlined_call_operand.vmem [shape: f32[1,384], index: 1, kind: input, shape index: {}]
  %s2 = inlined_call_operand.vmem [shape: f32[8,384], index: 2, kind: input, shape index: {}]
  %s3 = inlined_call_operand.vmem [shape: f32[8,384], index: 3, kind: input, shape index: {}]
  %s4 = inlined_call_operand.vmem [shape: f32[8,72], index: 4, kind: input, shape index: {}]
  %s5 = inlined_call_operand.vmem [shape: f32[8,1], index: 5, kind: input, shape index: {}]
  %s6 = inlined_call_operand.vmem [shape: f32[8,72], index: 6, kind: input, shape index: {}]
  %s7 = inlined_call_operand.vmem [shape: f32[8,1], index: 7, kind: input, shape index: {}]
  %s8 = inlined_call_operand.vmem [shape: f32[2,8,384], index: 8, kind: output, shape index: {}]
  %s9 = sld [smem:[#allocation0]]
  $region72: #{ode_block_forward.1} parent=0
    _
  %s11 = ssub.s32 1, %s9
  %s12 = scalar_select 0, %s11, %s9
  loop: start=0, step=1, limit=4
  $region2: #{ode_block_forward.1} parent=0 // loop_pre_header
    _
  $region3: #{ode_block_forward.1} parent=0 // loop_header
    %s14 = sphi 0, %s18
    %p15 = scmp.ge.s32.totalorder %s14, 4
    %s24 = sphi 0, %s26
    %s27 = sphi 0, %s24
    %s28 = sphi 0, %s27
    %s44 = sphi 0, %s28
    %s48 = sphi 0, %s48
    %s50 = sphi 0, %s48
    %s51 = sphi 0, %s50
    %s65 = sphi 0, %s51
    %s69 = sphi 0, %s69
    %s71 = sphi 0, %s69
    %s72 = sphi 0, %s71
    %s86 = sphi 0, %s72
    %s90 = sphi 0, %s90
    %s92 = sphi 0, %s90
    %s93 = sphi 0, %s92
    %s107 = sphi 0, %s93
    %s111 = sphi 0, %s111
    %s113 = sphi 0, %s111
    %s114 = sphi 0, %s113
    %s128 = sphi 0, %s114
    %s132 = sphi 0, %s132
    %s134 = sphi 0, %s132
    %s135 = sphi 0, %s134
    %s149 = sphi 0, %s135
    %s153 = sphi 0, %s153
    %s155 = sphi 0, %s153
    %s156 = sphi 0, %s155
    %s170 = sphi 0, %s156
    %s174 = sphi 0, %s174
    %s176 = sphi 0, %s174
    %s177 = sphi 0, %s176
    %s191 = sphi 0, %s177
    %s197 = sphi 0, %s199
    %s200 = sphi 0, %s197
    %s201 = sphi 0, %s200
    %s217 = sphi 0, %s201
  $region4: #{ode_block_forward.1} parent=0 // loop_header_branch
    %17 = sbr.rel (%p15) target = $region8
  $region5: #{ode_block_forward.1} parent=0 // loop_body
    %s19 = ssub.s32 %s14, 1
    %s20 = ssub.s32 %s14, 2
    %s21 = sadd.s32 %s14, 1
    %s22 = ssub.s32 %s14, %s21
    %p23 = scmp.eq.s32.totalorder %s22, 0
    %s25 = sadd.s32 %s24, 1
    %s26 = scalar_select %p23, %s24, %s25
    %p29 = pneg %p23
    %p30 = scmp.eq.s32.totalorder %s14, 1
    %p31 = por %p29, %p30
    %p32 = scmp.ne.s32.totalorder %s24, %s27
    %p33 = scmp.eq.s32.totalorder %s14, 0
    %p34 = por %p32, %p33
    %p35 = scmp.ne.s32.totalorder %s24, %s27
    %p36 = scmp.eq.s32.totalorder %s19, 1
    %p37 = por %p35, %p36
    %p38 = scmp.ne.s32.totalorder %s27, %s28
    %p39 = scmp.eq.s32.totalorder %s19, 0
    %p40 = por %p38, %p39
    %p41 = scmp.ne.s32.totalorder %s27, %s28
    %p42 = scmp.eq.s32.totalorder %s20, 1
    %p43 = por %p41, %p42
    %p45 = scmp.ne.s32.totalorder %s28, %s44
    %p46 = scmp.eq.s32.totalorder %s20, 0
    %p47 = por %p45, %p46
    %s49 = sadd.s32 %s48, 1
    %p52 = scmp.eq.s32.totalorder %s14, 1
    %p53 = scmp.ne.s32.totalorder %s48, %s50
    %p54 = scmp.eq.s32.totalorder %s14, 0
    %p55 = por %p53, %p54
    %p56 = scmp.ne.s32.totalorder %s48, %s50
    %p57 = scmp.eq.s32.totalorder %s19, 1
    %p58 = por %p56, %p57
    %p59 = scmp.ne.s32.totalorder %s50, %s51
    %p60 = scmp.eq.s32.totalorder %s19, 0
    %p61 = por %p59, %p60
    %p62 = scmp.ne.s32.totalorder %s50, %s51
    %p63 = scmp.eq.s32.totalorder %s20, 1
    %p64 = por %p62, %p63
    %p66 = scmp.ne.s32.totalorder %s51, %s65
    %p67 = scmp.eq.s32.totalorder %s20, 0
    %p68 = por %p66, %p67
    %s70 = sadd.s32 %s69, 1
    %p73 = scmp.eq.s32.totalorder %s14, 1
    %p74 = scmp.ne.s32.totalorder %s69, %s71
    %p75 = scmp.eq.s32.totalorder %s14, 0
    %p76 = por %p74, %p75
    %p77 = scmp.ne.s32.totalorder %s69, %s71
    %p78 = scmp.eq.s32.totalorder %s19, 1
    %p79 = por %p77, %p78
    %p80 = scmp.ne.s32.totalorder %s71, %s72
    %p81 = scmp.eq.s32.totalorder %s19, 0
    %p82 = por %p80, %p81
    %p83 = scmp.ne.s32.totalorder %s71, %s72
    %p84 = scmp.eq.s32.totalorder %s20, 1
    %p85 = por %p83, %p84
    %p87 = scmp.ne.s32.totalorder %s72, %s86
    %p88 = scmp.eq.s32.totalorder %s20, 0
    %p89 = por %p87, %p88
    %s91 = sadd.s32 %s90, 1
    %p94 = scmp.eq.s32.totalorder %s14, 1
    %p95 = scmp.ne.s32.totalorder %s90, %s92
    %p96 = scmp.eq.s32.totalorder %s14, 0
    %p97 = por %p95, %p96
    %p98 = scmp.ne.s32.totalorder %s90, %s92
    %p99 = scmp.eq.s32.totalorder %s19, 1
    %p100 = por %p98, %p99
    %p101 = scmp.ne.s32.totalorder %s92, %s93
    %p102 = scmp.eq.s32.totalorder %s19, 0
    %p103 = por %p101, %p102
    %p104 = scmp.ne.s32.totalorder %s92, %s93
    %p105 = scmp.eq.s32.totalorder %s20, 1
    %p106 = por %p104, %p105
    %p108 = scmp.ne.s32.totalorder %s93, %s107
    %p109 = scmp.eq.s32.totalorder %s20, 0
    %p110 = por %p108, %p109
    %s112 = sadd.s32 %s111, 1
    %p115 = scmp.eq.s32.totalorder %s14, 1
    %p116 = scmp.ne.s32.totalorder %s111, %s113
    %p117 = scmp.eq.s32.totalorder %s14, 0
    %p118 = por %p116, %p117
    %p119 = scmp.ne.s32.totalorder %s111, %s113
    %p120 = scmp.eq.s32.totalorder %s19, 1
    %p121 = por %p119, %p120
    %p122 = scmp.ne.s32.totalorder %s113, %s114
    %p123 = scmp.eq.s32.totalorder %s19, 0
    %p124 = por %p122, %p123
    %p125 = scmp.ne.s32.totalorder %s113, %s114
    %p126 = scmp.eq.s32.totalorder %s20, 1
    %p127 = por %p125, %p126
    %p129 = scmp.ne.s32.totalorder %s114, %s128
    %p130 = scmp.eq.s32.totalorder %s20, 0
    %p131 = por %p129, %p130
    %s133 = sadd.s32 %s132, 1
    %p136 = scmp.eq.s32.totalorder %s14, 1
    %p137 = scmp.ne.s32.totalorder %s132, %s134
    %p138 = scmp.eq.s32.totalorder %s14, 0
    %p139 = por %p137, %p138
    %p140 = scmp.ne.s32.totalorder %s132, %s134
    %p141 = scmp.eq.s32.totalorder %s19, 1
    %p142 = por %p140, %p141
    %p143 = scmp.ne.s32.totalorder %s134, %s135
    %p144 = scmp.eq.s32.totalorder %s19, 0
    %p145 = por %p143, %p144
    %p146 = scmp.ne.s32.totalorder %s134, %s135
    %p147 = scmp.eq.s32.totalorder %s20, 1
    %p148 = por %p146, %p147
    %p150 = scmp.ne.s32.totalorder %s135, %s149
    %p151 = scmp.eq.s32.totalorder %s20, 0
    %p152 = por %p150, %p151
    %s154 = sadd.s32 %s153, 1
    %p157 = scmp.eq.s32.totalorder %s14, 1
    %p158 = scmp.ne.s32.totalorder %s153, %s155
    %p159 = scmp.eq.s32.totalorder %s14, 0
    %p160 = por %p158, %p159
    %p161 = scmp.ne.s32.totalorder %s153, %s155
    %p162 = scmp.eq.s32.totalorder %s19, 1
    %p163 = por %p161, %p162
    %p164 = scmp.ne.s32.totalorder %s155, %s156
    %p165 = scmp.eq.s32.totalorder %s19, 0
    %p166 = por %p164, %p165
    %p167 = scmp.ne.s32.totalorder %s155, %s156
    %p168 = scmp.eq.s32.totalorder %s20, 1
    %p169 = por %p167, %p168
    %p171 = scmp.ne.s32.totalorder %s156, %s170
    %p172 = scmp.eq.s32.totalorder %s20, 0
    %p173 = por %p171, %p172
    %s175 = sadd.s32 %s174, 1
    %p178 = scmp.eq.s32.totalorder %s14, 1
    %p179 = scmp.ne.s32.totalorder %s174, %s176
    %p180 = scmp.eq.s32.totalorder %s14, 0
    %p181 = por %p179, %p180
    %p182 = scmp.ne.s32.totalorder %s174, %s176
    %p183 = scmp.eq.s32.totalorder %s19, 1
    %p184 = por %p182, %p183
    %p185 = scmp.ne.s32.totalorder %s176, %s177
    %p186 = scmp.eq.s32.totalorder %s19, 0
    %p187 = por %p185, %p186
    %p188 = scmp.ne.s32.totalorder %s176, %s177
    %p189 = scmp.eq.s32.totalorder %s20, 1
    %p190 = por %p188, %p189
    %p192 = scmp.ne.s32.totalorder %s177, %s191
    %p193 = scmp.eq.s32.totalorder %s20, 0
    %p194 = por %p192, %p193
    %s195 = ssub.s32 %s14, %s21
    %p196 = scmp.eq.s32.totalorder %s195, 0
    %s198 = sadd.s32 %s197, 1
    %s199 = scalar_select %p196, %s197, %s198
    %p202 = pneg %p196
    %p203 = scmp.eq.s32.totalorder %s14, 1
    %p204 = por %p202, %p203
    %p205 = scmp.ne.s32.totalorder %s197, %s200
    %p206 = scmp.eq.s32.totalorder %s14, 0
    %p207 = por %p205, %p206
    %p208 = scmp.ne.s32.totalorder %s197, %s200
    %p209 = scmp.eq.s32.totalorder %s19, 1
    %p210 = por %p208, %p209
    %p211 = scmp.ne.s32.totalorder %s200, %s201
    %p212 = scmp.eq.s32.totalorder %s19, 0
    %p213 = por %p211, %p212
    %p214 = scmp.ne.s32.totalorder %s200, %s201
    %p215 = scmp.eq.s32.totalorder %s20, 1
    %p216 = por %p214, %p215
    %p218 = scmp.ne.s32.totalorder %s201, %s217
    %p219 = scmp.eq.s32.totalorder %s20, 0
    %p220 = por %p218, %p219
    %p221 = scmp.le.s32.totalorder 1, %s14
    %p222 = scmp.lt.s32.totalorder %s14, 3
    %p223 = pnand %p221, %p222
    %p224 = pneg %p223
    // Predicated region
    $region9: #{ode_block_forward.1} parent=5 // pred_check
      _
    $region10: #{ode_block_forward.1} parent=5 // pred_check_branch
      %226 = sbr.rel (%p223) target = $region12
    $region11: #{ode_block_forward.1} parent=5 // pred_region
      %s227 = ssub.s32 %s14, 1
      // Predicated region
      $region13: #{ode_block_forward.1} parent=11 // pred_check
        %p228 = pneg %p61
      $region14: #{ode_block_forward.1} parent=11 // pred_check_branch
        %230 = sbr.rel (%p228) target = $region16
      $region15: #{ode_block_forward.1} parent=11 // pred_region
        _
      $region16: #{ode_block_forward.1} parent=11 // pred_fallthru
        _
      // Predicated region
      $region17: #{ode_block_forward.1} parent=11 // pred_check
        %p231 = pneg %p82
      $region18: #{ode_block_forward.1} parent=11 // pred_check_branch
        %233 = sbr.rel (%p231) target = $region20
      $region19: #{ode_block_forward.1} parent=11 // pred_region
        _
      $region20: #{ode_block_forward.1} parent=11 // pred_fallthru
        _
      // Predicated region
      $region21: #{ode_block_forward.1} parent=11 // pred_check
        %p234 = pneg %p103
      $region22: #{ode_block_forward.1} parent=11 // pred_check_branch
        %236 = sbr.rel (%p234) target = $region24
      $region23: #{ode_block_forward.1} parent=11 // pred_region
        _
      $region24: #{ode_block_forward.1} parent=11 // pred_fallthru
        _
      // Predicated region
      $region25: #{ode_block_forward.1} parent=11 // pred_check
        %p237 = pneg %p124
      $region26: #{ode_block_forward.1} parent=11 // pred_check_branch
        %239 = sbr.rel (%p237) target = $region28
      $region27: #{ode_block_forward.1} parent=11 // pred_region
        _
      $region28: #{ode_block_forward.1} parent=11 // pred_fallthru
        _
      // Predicated region
      $region29: #{ode_block_forward.1} parent=11 // pred_check
        %p240 = pneg %p145
      $region30: #{ode_block_forward.1} parent=11 // pred_check_branch
        %242 = sbr.rel (%p240) target = $region32
      $region31: #{ode_block_forward.1} parent=11 // pred_region
        _
      $region32: #{ode_block_forward.1} parent=11 // pred_fallthru
        _
      // Predicated region
      $region33: #{ode_block_forward.1} parent=11 // pred_check
        %p243 = pneg %p166
      $region34: #{ode_block_forward.1} parent=11 // pred_check_branch
        %245 = sbr.rel (%p243) target = $region36
      $region35: #{ode_block_forward.1} parent=11 // pred_region
        _
      $region36: #{ode_block_forward.1} parent=11 // pred_fallthru
        _
      // Predicated region
      $region37: #{ode_block_forward.1} parent=11 // pred_check
        %p246 = pneg %p187
      $region38: #{ode_block_forward.1} parent=11 // pred_check_branch
        %248 = sbr.rel (%p246) target = $region40
      $region39: #{ode_block_forward.1} parent=11 // pred_region
        _
      $region40: #{ode_block_forward.1} parent=11 // pred_fallthru
        _
    $region12: #{ode_block_forward.1} parent=5 // pred_fallthru
      _
    %p249 = scmp.lt.s32.totalorder %s14, 2
    // Predicated region
    $region41: #{ode_block_forward.1} parent=5 // pred_check
      %p250 = pneg %p249
    $region42: #{ode_block_forward.1} parent=5 // pred_check_branch
      %252 = sbr.rel (%p250) target = $region44
    $region43: #{ode_block_forward.1} parent=5 // pred_region
      // Predicated region
      $region45: #{ode_block_forward.1} parent=43 // pred_check
        %p253 = pneg %p34
      $region46: #{ode_block_forward.1} parent=43 // pred_check_branch
        %255 = sbr.rel (%p253) target = $region48
      $region47: #{ode_block_forward.1} parent=43 // pred_region
        %p256 = scmp.lt.s32.totalorder %s14, 1
        %s257 = scalar_select %p256, %s14, 1
        %s258 = smul.addr %s257, 3
        %s259 = smul.addr %s258, 8
        %s260 = scalar_lea.vmem %s0, %s259
      $region48: #{ode_block_forward.1} parent=43 // pred_fallthru
        _
    $region44: #{ode_block_forward.1} parent=5 // pred_fallthru
      _
    %p261 = scmp.le.s32.totalorder 1, %s14
    %p262 = scmp.lt.s32.totalorder %s14, 3
    %p263 = pnand %p261, %p262
    %p264 = pneg %p263
    // Predicated region
    $region49: #{ode_block_forward.1} parent=5 // pred_check
      _
    $region50: #{ode_block_forward.1} parent=5 // pred_check_branch
      %266 = sbr.rel (%p263) target = $region52
    $region51: #{ode_block_forward.1} parent=5 // pred_region
      %s267 = ssub.s32 %s14, 1
      %p268 = scmp.lt.s32.totalorder %s19, 1
      %s269 = scalar_select %p268, %s19, 1
      %s270 = smul.addr %s269, 3
      %s271 = smul.addr %s270, 8
      %s272 = scalar_lea.vmem %s0, %s271
      %p273 = pneg %p40
      %p274 = pneg %p37
      %p275 = pneg %p61
      %p276 = pneg %p58
      %p277 = pneg %p82
      %p278 = pneg %p79
      %p279 = pneg %p103
      %p280 = pneg %p100
      %p281 = pneg %p124
      %p282 = pneg %p121
      %p283 = pneg %p145
      %p284 = pneg %p142
      %p285 = pneg %p166
      %p286 = pneg %p163
      %p287 = pneg %p187
      %p288 = pneg %p184
      %p289 = pneg %p213
      %p290 = pneg %p210
      %p291 = scmp.lt.s32.totalorder %s19, 1
      %s292 = scalar_select %p291, %s19, 1
      %s293 = smul.addr %s292, 3
      %s294 = smul.addr %s293, 8
      %s295 = scalar_lea.vmem %s8, %s294
      %p296 = scmp.lt.s32.totalorder %s19, 1
      %s297 = scalar_select %p296, %s19, 1
      %s298 = smul.addr %s297, 3
      %s299 = smul.addr %s298, 8
      %s300 = scalar_lea.vmem %s0, %s299
      %p301 = scmp.lt.s32.totalorder %s19, 1
      %s302 = scalar_select %p301, %s19, 1
      %s303 = smul.addr %s302, 3
      %s304 = smul.addr %s303, 8
      %s305 = scalar_lea.vmem %s8, %s304
      %v306 = vld [vmem:[%s1] sm:$0x7]
      %v307 = vld [vmem:[%s2] sm:$0xff]
      %v308 = vld [vmem:[%s2 + $0x8] sm:$0xff]
      %v309 = vld [vmem:[%s2 + $0x10] sm:$0xff]
      %v310 = vld [vmem:[%s3] sm:$0xff]
      %v311 = vld [vmem:[%s3 + $0x8] sm:$0xff]
      %v312 = vld [vmem:[%s3 + $0x10] sm:$0xff]
      %v313 = vld [vmem:[%s4] sm:$0xff]
      %v314 = vld [vmem:[%s5] sm:$0xff]
      %v315 = vld [vmem:[%s6] sm:$0xff]
      %v316 = vld [vmem:[%s7] sm:$0xff]
      %v317 = vld [vmem:[%s300] sm:$0xff]
      %v318 = vld [vmem:[%s300 + $0x8] sm:$0xff]
      %v319 = vld [vmem:[%s300 + $0x10] sm:$0xff]
      loop: start=0, step=1, limit=8
      $region53: #{ode_block_forward.1} parent=51 // loop_pre_header
        _
      $region54: #{ode_block_forward.1} parent=51 // loop_header
        %s321 = sphi 0, %s325
        %p322 = scmp.ge.s32.totalorder %s321, 8
        %v326 = vphi %v317, %v2197
        %v327 = vphi %v318, %v2198
        %v328 = vphi %v319, %v2199
      $region55: #{ode_block_forward.1} parent=51 // loop_header_branch
        %324 = sbr.rel (%p322) target = $region59
      $region56: #{ode_block_forward.1} parent=51 // loop_body
        %s329 = scvt.s32.f32 %s321
        %s330 = smul.f32 %s329, 0.125
        %331 = vrot.lane.b32.xlu0 %v326, 19
        %v332 = vpop.permute.xlu0 %331
        %333 = vrot.lane.b32.xlu0 %v327, 19
        %v334 = vpop.permute.xlu0 %333
        %335 = vrot.lane.b32.xlu0 %v328, 19
        %v336 = vpop.permute.xlu0 %335
        %v337 = vlaneseq
        %v338 = vand.u32 %v337, 127
        %vm339 = vcmp.lt.s32.totalorder %v338, 19
        %v340 = vsel %vm339, %v334, %v336
        %v341 = vsel %vm339, %v332, %v334
        %v342 = vsel %vm339, %v336, %v332
        %343 = vrot.lane.b32.xlu0 %v326, 18
        %v344 = vpop.permute.xlu0 %343
        %345 = vrot.lane.b32.xlu0 %v327, 18
        %v346 = vpop.permute.xlu0 %345
        %347 = vrot.lane.b32.xlu0 %v328, 18
        %v348 = vpop.permute.xlu0 %347
        %vm349 = vcmp.lt.s32.totalorder %v338, 18
        %v350 = vsel %vm349, %v346, %v348
        %v351 = vsel %vm349, %v344, %v346
        %v352 = vsel %vm349, %v348, %v344
        %353 = vrot.lane.b32.xlu0 %v326, 17
        %v354 = vpop.permute.xlu0 %353
        %355 = vrot.lane.b32.xlu0 %v327, 17
        %v356 = vpop.permute.xlu0 %355
        %357 = vrot.lane.b32.xlu0 %v328, 17
        %v358 = vpop.permute.xlu0 %357
        %vm359 = vcmp.lt.s32.totalorder %v338, 17
        %v360 = vsel %vm359, %v356, %v358
        %v361 = vsel %vm359, %v354, %v356
        %v362 = vsel %vm359, %v358, %v354
        %363 = vrot.lane.b32.xlu0 %v326, 1
        %v364 = vpop.permute.xlu0 %363
        %365 = vrot.lane.b32.xlu0 %v327, 1
        %v366 = vpop.permute.xlu0 %365
        %367 = vrot.lane.b32.xlu0 %v328, 1
        %v368 = vpop.permute.xlu0 %367
        %vm369 = vcmp.lt.s32.totalorder %v338, 1
        %v370 = vsel %vm369, %v366, %v368
        %v371 = vsel %vm369, %v364, %v366
        %v372 = vsel %vm369, %v368, %v364
        %373 = vrot.lane.b32.xlu0 %v326, 127
        %v374 = vpop.permute.xlu0 %373
        %375 = vrot.lane.b32.xlu0 %v327, 127
        %v376 = vpop.permute.xlu0 %375
        %377 = vrot.lane.b32.xlu0 %v328, 127
        %v378 = vpop.permute.xlu0 %377
        %vm379 = vcmp.lt.s32.totalorder %v338, 127
        %v380 = vsel %vm379, %v376, %v378
        %v381 = vsel %vm379, %v374, %v376
        %v382 = vsel %vm379, %v378, %v374
        %383 = vrot.lane.b32.xlu0 %v326, 111
        %v384 = vpop.permute.xlu0 %383
        %385 = vrot.lane.b32.xlu0 %v327, 111
        %v386 = vpop.permute.xlu0 %385
        %387 = vrot.lane.b32.xlu0 %v328, 111
        %v388 = vpop.permute.xlu0 %387
        %vm389 = vcmp.lt.s32.totalorder %v338, 111
        %v390 = vsel %vm389, %v386, %v388
        %v391 = vsel %vm389, %v384, %v386
        %v392 = vsel %vm389, %v388, %v384
        %393 = vrot.lane.b32.xlu0 %v326, 110
        %v394 = vpop.permute.xlu0 %393
        %395 = vrot.lane.b32.xlu0 %v327, 110
        %v396 = vpop.permute.xlu0 %395
        %397 = vrot.lane.b32.xlu0 %v328, 110
        %v398 = vpop.permute.xlu0 %397
        %vm399 = vcmp.lt.s32.totalorder %v338, 110
        %v400 = vsel %vm399, %v396, %v398
        %v401 = vsel %vm399, %v394, %v396
        %v402 = vsel %vm399, %v398, %v394
        %403 = vrot.lane.b32.xlu0 %v326, 109
        %v404 = vpop.permute.xlu0 %403
        %405 = vrot.lane.b32.xlu0 %v327, 109
        %v406 = vpop.permute.xlu0 %405
        %407 = vrot.lane.b32.xlu0 %v328, 109
        %v408 = vpop.permute.xlu0 %407
        %vm409 = vcmp.lt.s32.totalorder %v338, 109
        %v410 = vsel %vm409, %v406, %v408
        %v411 = vsel %vm409, %v404, %v406
        %v412 = vsel %vm409, %v408, %v404
        %v413 = vstv %s330
        %v414 = vmul.f32 %v413, %v307
        %v415 = vmul.f32 %v413, %v308
        %v416 = vmul.f32 %v413, %v309
        %vm417 = vcmask 588800
        %v419 = vsel %vm417, %v313, 0
        %421 = vmatprep.subr.mxu0 0.0
        %422 = vmatpush1.msra.mxu0 0.0
        %423 = vmatprep.subr.mxu0 0.0
        %424 = vmatpush1.msra.mxu0 0.0
        %425 = vmatprep.subr.mxu0 0.0
        %426 = vmatpush1.msra.mxu0 0.0
        %427 = vmatprep.subr.mxu0 0.0
        %428 = vmatpush1.msra.mxu0 0.0
        %429 = vmatprep.subr.mxu0 0.0
        %430 = vmatpush1.msra.mxu0 0.0
        %431 = vmatprep.subr.mxu0 0.0
        %432 = vmatpush1.msra.mxu0 0.0
        %433 = vmatprep.subr.mxu0 0.0
        %434 = vmatpush1.msra.mxu0 0.0
        %435 = vmatprep.subr.mxu0 %v410
        %436 = vmatpush1.msra.mxu0 %v411
        %437 = vmatprep.subr.mxu0 %v400
        %438 = vmatpush1.msra.mxu0 %v401
        %439 = vmatprep.subr.mxu0 %v390
        %440 = vmatpush1.msra.mxu0 %v391
        %441 = vmatprep.subr.mxu0 %v380
        %442 = vmatpush1.msra.mxu0 %v381
        %443 = vmatprep.subr.mxu0 %v327
        %444 = vmatpush1.msra.mxu0 %v326
        %445 = vmatprep.subr.mxu0 %v371
        %446 = vmatpush1.msra.mxu0 %v372
        %447 = vmatprep.subr.mxu0 %v361
        %448 = vmatpush1.msra.mxu0 %v362
        %449 = vmatprep.subr.mxu0 %v351
        %450 = vmatpush1.msra.mxu0 %v352
        %451 = vmatprep.subr.mxu0 %v341
        %452 = vmatpush1.msra.mxu0 %v342
        %453 = vmatprep.subr.mxu0 0.0
        %454 = vmatpush2.msra.mxu0 0.0
        %455 = vmatprep.subr.mxu0 0.0
        %456 = vmatpush2.msra.mxu0 0.0
        %457 = vmatprep.subr.mxu0 0.0
        %458 = vmatpush2.msra.mxu0 0.0
        %459 = vmatprep.subr.mxu0 0.0
        %460 = vmatpush2.msra.mxu0 0.0
        %461 = vmatprep.subr.mxu0 0.0
        %462 = vmatpush2.msra.mxu0 0.0
        %463 = vmatprep.subr.mxu0 0.0
        %464 = vmatpush2.msra.mxu0 0.0
        %465 = vmatprep.subr.mxu0 0.0
        %466 = vmatpush2.msra.mxu0 0.0
        %467 = vmatprep.subr.mxu0 0.0
        %468 = vmatpush2.msra.mxu0 0.0
        %469 = vmatprep.subr.mxu0 0.0
        %470 = vmatpush2.msra.mxu0 0.0
        %471 = vmatprep.subr.mxu0 0.0
        %472 = vmatpush2.msra.mxu0 0.0
        %473 = vmatprep.subr.mxu0 0.0
        %474 = vmatpush2.msra.mxu0 0.0
        %475 = vmatprep.subr.mxu0 0.0
        %476 = vmatpush2.msra.mxu0 0.0
        %477 = vmatprep.subr.mxu0 0.0
        %478 = vmatpush2.msra.mxu0 0.0
        %479 = vmatprep.subr.mxu0 0.0
        %480 = vmatpush2.msra.mxu0 0.0
        %481 = vmatprep.subr.mxu0 0.0
        %482 = vmatpush2.msra.mxu0 0.0
        %483 = vmatprep.subr.mxu0 0.0
        %484 = vmatpush2.msra.mxu0 0.0
        %485 = vmatprep.mubr.f32.mxu0 0.0
        %486 = vmatmul.mubr.f32.gmra.mxu0 %v419
        %v487 = vpop.f32.mrf.mxu0
        %v488 = vadd.f32 %v414, %v487
        %v489 = vpop.f32.mrf.mxu0
        %v490 = vadd.f32 %v415, %v489
        %491 = vdwg.mxu0
        %492 = vmatprep.subr.mxu0 0.0
        %493 = vmatpush1.msra.mxu0 0.0
        %494 = vmatprep.subr.mxu0 0.0
        %495 = vmatpush1.msra.mxu0 0.0
        %496 = vmatprep.subr.mxu0 0.0
        %497 = vmatpush1.msra.mxu0 0.0
        %498 = vmatprep.subr.mxu0 0.0
        %499 = vmatpush1.msra.mxu0 0.0
        %500 = vmatprep.subr.mxu0 0.0
        %501 = vmatpush1.msra.mxu0 0.0
        %502 = vmatprep.subr.mxu0 0.0
        %503 = vmatpush1.msra.mxu0 0.0
        %504 = vmatprep.subr.mxu0 0.0
        %505 = vmatpush1.msra.mxu0 0.0
        %506 = vmatprep.subr.mxu0 0.0
        %507 = vmatpush1.msra.mxu0 %v412
        %508 = vmatprep.subr.mxu0 0.0
        %509 = vmatpush1.msra.mxu0 %v402
        %510 = vmatprep.subr.mxu0 0.0
        %511 = vmatpush1.msra.mxu0 %v392
        %512 = vmatprep.subr.mxu0 0.0
        %513 = vmatpush1.msra.mxu0 %v382
        %514 = vmatprep.subr.mxu0 0.0
        %515 = vmatpush1.msra.mxu0 %v328
        %516 = vmatprep.subr.mxu0 0.0
        %517 = vmatpush1.msra.mxu0 %v370
        %518 = vmatprep.subr.mxu0 0.0
        %519 = vmatpush1.msra.mxu0 %v360
        %520 = vmatprep.subr.mxu0 0.0
        %521 = vmatpush1.msra.mxu0 %v350
        %522 = vmatprep.subr.mxu0 0.0
        %523 = vmatpush1.msra.mxu0 %v340
        %524 = vmatprep.subr.mxu0 0.0
        %525 = vmatpush2.msra.mxu0 0.0
        %526 = vmatprep.subr.mxu0 0.0
        %527 = vmatpush2.msra.mxu0 0.0
        %528 = vmatprep.subr.mxu0 0.0
        %529 = vmatpush2.msra.mxu0 0.0
        %530 = vmatprep.subr.mxu0 0.0
        %531 = vmatpush2.msra.mxu0 0.0
        %532 = vmatprep.subr.mxu0 0.0
        %533 = vmatpush2.msra.mxu0 0.0
        %534 = vmatprep.subr.mxu0 0.0
        %535 = vmatpush2.msra.mxu0 0.0
        %536 = vmatprep.subr.mxu0 0.0
        %537 = vmatpush2.msra.mxu0 0.0
        %538 = vmatprep.subr.mxu0 0.0
        %539 = vmatpush2.msra.mxu0 0.0
        %540 = vmatprep.subr.mxu0 0.0
        %541 = vmatpush2.msra.mxu0 0.0
        %542 = vmatprep.subr.mxu0 0.0
        %543 = vmatpush2.msra.mxu0 0.0
        %544 = vmatprep.subr.mxu0 0.0
        %545 = vmatpush2.msra.mxu0 0.0
        %546 = vmatprep.subr.mxu0 0.0
        %547 = vmatpush2.msra.mxu0 0.0
        %548 = vmatprep.subr.mxu0 0.0
        %549 = vmatpush2.msra.mxu0 0.0
        %550 = vmatprep.subr.mxu0 0.0
        %551 = vmatpush2.msra.mxu0 0.0
        %552 = vmatprep.subr.mxu0 0.0
        %553 = vmatpush2.msra.mxu0 0.0
        %554 = vmatprep.subr.mxu0 0.0
        %555 = vmatpush2.msra.mxu0 0.0
        %556 = vmatprep.mubr.f32.mxu0 0.0
        %557 = vmatmul.mubr.f32.gmra.mxu0 %v419
        %v558 = vpop.f32.mrf.mxu0
        %v559 = vadd.f32 %v416, %v558
        %v560 = vpop.f32.mrf.mxu0
        %561 = vdwg.mxu0
        %563 = vset.pattern.permute.xlu0 0
        %564 = vperm.xlu0 %563, %v314
        %v565 = vpop.permute.xlu0 %564
        %v567 = vadd.f32 %v488, %v565
        %v568 = vadd.f32 %v490, %v565
        %v569 = vadd.f32 %v559, %v565
        %v570 = vmax.f32 %v567, 0.0
        %v571 = vmax.f32 %v568, 0.0
        %v572 = vmax.f32 %v569, 0.0
        %v574 = vlaneseq
        %v575 = vshrl.u32 %v574, 7
        %v576 = vsub.s32 0, %v575
        %v577 = vrot.slane %v306, %v576
        %v578 = vlaneseq
        %v579 = vshrl.u32 %v578, 7
        %v580 = vsub.s32 1, %v579
        %v581 = vrot.slane %v306, %v580
        %v582 = vlaneseq
        %v583 = vshrl.u32 %v582, 7
        %v584 = vsub.s32 2, %v583
        %v585 = vrot.slane %v306, %v584
        %v589 = vmul.f32 %v570, %v577
        %v590 = vmul.f32 %v571, %v581
        %v591 = vmul.f32 %v572, %v585
        %592 = vrot.lane.b32.xlu0 %v589, 19
        %v593 = vpop.permute.xlu0 %592
        %594 = vrot.lane.b32.xlu0 %v590, 19
        %v595 = vpop.permute.xlu0 %594
        %596 = vrot.lane.b32.xlu0 %v591, 19
        %v597 = vpop.permute.xlu0 %596
        %v598 = vsel %vm339, %v595, %v597
        %v599 = vsel %vm339, %v593, %v595
        %v600 = vsel %vm339, %v597, %v593
        %601 = vrot.lane.b32.xlu0 %v589, 18
        %v602 = vpop.permute.xlu0 %601
        %603 = vrot.lane.b32.xlu0 %v590, 18
        %v604 = vpop.permute.xlu0 %603
        %605 = vrot.lane.b32.xlu0 %v591, 18
        %v606 = vpop.permute.xlu0 %605
        %v607 = vsel %vm349, %v604, %v606
        %v608 = vsel %vm349, %v602, %v604
        %v609 = vsel %vm349, %v606, %v602
        %610 = vrot.lane.b32.xlu0 %v589, 17
        %v611 = vpop.permute.xlu0 %610
        %612 = vrot.lane.b32.xlu0 %v590, 17
        %v613 = vpop.permute.xlu0 %612
        %614 = vrot.lane.b32.xlu0 %v591, 17
        %v615 = vpop.permute.xlu0 %614
        %v616 = vsel %vm359, %v613, %v615
        %v617 = vsel %vm359, %v611, %v613
        %v618 = vsel %vm359, %v615, %v611
        %619 = vrot.lane.b32.xlu0 %v589, 1
        %v620 = vpop.permute.xlu0 %619
        %621 = vrot.lane.b32.xlu0 %v590, 1
        %v622 = vpop.permute.xlu0 %621
        %623 = vrot.lane.b32.xlu0 %v591, 1
        %v624 = vpop.permute.xlu0 %623
        %v625 = vsel %vm369, %v622, %v624
        %v626 = vsel %vm369, %v620, %v622
        %v627 = vsel %vm369, %v624, %v620
        %628 = vrot.lane.b32.xlu0 %v589, 127
        %v629 = vpop.permute.xlu0 %628
        %630 = vrot.lane.b32.xlu0 %v590, 127
        %v631 = vpop.permute.xlu0 %630
        %632 = vrot.lane.b32.xlu0 %v591, 127
        %v633 = vpop.permute.xlu0 %632
        %v634 = vsel %vm379, %v631, %v633
        %v635 = vsel %vm379, %v629, %v631
        %v636 = vsel %vm379, %v633, %v629
        %637 = vrot.lane.b32.xlu0 %v589, 111
        %v638 = vpop.permute.xlu0 %637
        %639 = vrot.lane.b32.xlu0 %v590, 111
        %v640 = vpop.permute.xlu0 %639
        %641 = vrot.lane.b32.xlu0 %v591, 111
        %v642 = vpop.permute.xlu0 %641
        %v643 = vsel %vm389, %v640, %v642
        %v644 = vsel %vm389, %v638, %v640
        %v645 = vsel %vm389, %v642, %v638
        %646 = vrot.lane.b32.xlu0 %v589, 110
        %v647 = vpop.permute.xlu0 %646
        %648 = vrot.lane.b32.xlu0 %v590, 110
        %v649 = vpop.permute.xlu0 %648
        %650 = vrot.lane.b32.xlu0 %v591, 110
        %v651 = vpop.permute.xlu0 %650
        %v652 = vsel %vm399, %v649, %v651
        %v653 = vsel %vm399, %v647, %v649
        %v654 = vsel %vm399, %v651, %v647
        %655 = vrot.lane.b32.xlu0 %v589, 109
        %v656 = vpop.permute.xlu0 %655
        %657 = vrot.lane.b32.xlu0 %v590, 109
        %v658 = vpop.permute.xlu0 %657
        %659 = vrot.lane.b32.xlu0 %v591, 109
        %v660 = vpop.permute.xlu0 %659
        %v661 = vsel %vm409, %v658, %v660
        %v662 = vsel %vm409, %v656, %v658
        %v663 = vsel %vm409, %v660, %v656
        %v664 = vmul.f32 %v413, %v310
        %v665 = vmul.f32 %v413, %v311
        %v666 = vmul.f32 %v413, %v312
        %v668 = vsel %vm417, %v315, 0
        %670 = vmatprep.subr.mxu0 0.0
        %671 = vmatpush1.msra.mxu0 0.0
        %672 = vmatprep.subr.mxu0 0.0
        %673 = vmatpush1.msra.mxu0 0.0
        %674 = vmatprep.subr.mxu0 0.0
        %675 = vmatpush1.msra.mxu0 0.0
        %676 = vmatprep.subr.mxu0 0.0
        %677 = vmatpush1.msra.mxu0 0.0
        %678 = vmatprep.subr.mxu0 0.0
        %679 = vmatpush1.msra.mxu0 0.0
        %680 = vmatprep.subr.mxu0 0.0
        %681 = vmatpush1.msra.mxu0 0.0
        %682 = vmatprep.subr.mxu0 0.0
        %683 = vmatpush1.msra.mxu0 0.0
        %684 = vmatprep.subr.mxu0 %v661
        %685 = vmatpush1.msra.mxu0 %v662
        %686 = vmatprep.subr.mxu0 %v652
        %687 = vmatpush1.msra.mxu0 %v653
        %688 = vmatprep.subr.mxu0 %v643
        %689 = vmatpush1.msra.mxu0 %v644
        %690 = vmatprep.subr.mxu0 %v634
        %691 = vmatpush1.msra.mxu0 %v635
        %692 = vmatprep.subr.mxu0 %v590
        %693 = vmatpush1.msra.mxu0 %v589
        %694 = vmatprep.subr.mxu0 %v626
        %695 = vmatpush1.msra.mxu0 %v627
        %696 = vmatprep.subr.mxu0 %v617
        %697 = vmatpush1.msra.mxu0 %v618
        %698 = vmatprep.subr.mxu0 %v608
        %699 = vmatpush1.msra.mxu0 %v609
        %700 = vmatprep.subr.mxu0 %v599
        %701 = vmatpush1.msra.mxu0 %v600
        %702 = vmatprep.subr.mxu0 0.0
        %703 = vmatpush2.msra.mxu0 0.0
        %704 = vmatprep.subr.mxu0 0.0
        %705 = vmatpush2.msra.mxu0 0.0
        %706 = vmatprep.subr.mxu0 0.0
        %707 = vmatpush2.msra.mxu0 0.0
        %708 = vmatprep.subr.mxu0 0.0
        %709 = vmatpush2.msra.mxu0 0.0
        %710 = vmatprep.subr.mxu0 0.0
        %711 = vmatpush2.msra.mxu0 0.0
        %712 = vmatprep.subr.mxu0 0.0
        %713 = vmatpush2.msra.mxu0 0.0
        %714 = vmatprep.subr.mxu0 0.0
        %715 = vmatpush2.msra.mxu0 0.0
        %716 = vmatprep.subr.mxu0 0.0
        %717 = vmatpush2.msra.mxu0 0.0
        %718 = vmatprep.subr.mxu0 0.0
        %719 = vmatpush2.msra.mxu0 0.0
        %720 = vmatprep.subr.mxu0 0.0
        %721 = vmatpush2.msra.mxu0 0.0
        %722 = vmatprep.subr.mxu0 0.0
        %723 = vmatpush2.msra.mxu0 0.0
        %724 = vmatprep.subr.mxu0 0.0
        %725 = vmatpush2.msra.mxu0 0.0
        %726 = vmatprep.subr.mxu0 0.0
        %727 = vmatpush2.msra.mxu0 0.0
        %728 = vmatprep.subr.mxu0 0.0
        %729 = vmatpush2.msra.mxu0 0.0
        %730 = vmatprep.subr.mxu0 0.0
        %731 = vmatpush2.msra.mxu0 0.0
        %732 = vmatprep.subr.mxu0 0.0
        %733 = vmatpush2.msra.mxu0 0.0
        %734 = vmatprep.mubr.f32.mxu0 0.0
        %735 = vmatmul.mubr.f32.gmra.mxu0 %v668
        %v736 = vpop.f32.mrf.mxu0
        %v737 = vadd.f32 %v664, %v736
        %v738 = vpop.f32.mrf.mxu0
        %v739 = vadd.f32 %v665, %v738
        %740 = vdwg.mxu0
        %741 = vmatprep.subr.mxu0 0.0
        %742 = vmatpush1.msra.mxu0 0.0
        %743 = vmatprep.subr.mxu0 0.0
        %744 = vmatpush1.msra.mxu0 0.0
        %745 = vmatprep.subr.mxu0 0.0
        %746 = vmatpush1.msra.mxu0 0.0
        %747 = vmatprep.subr.mxu0 0.0
        %748 = vmatpush1.msra.mxu0 0.0
        %749 = vmatprep.subr.mxu0 0.0
        %750 = vmatpush1.msra.mxu0 0.0
        %751 = vmatprep.subr.mxu0 0.0
        %752 = vmatpush1.msra.mxu0 0.0
        %753 = vmatprep.subr.mxu0 0.0
        %754 = vmatpush1.msra.mxu0 0.0
        %755 = vmatprep.subr.mxu0 0.0
        %756 = vmatpush1.msra.mxu0 %v663
        %757 = vmatprep.subr.mxu0 0.0
        %758 = vmatpush1.msra.mxu0 %v654
        %759 = vmatprep.subr.mxu0 0.0
        %760 = vmatpush1.msra.mxu0 %v645
        %761 = vmatprep.subr.mxu0 0.0
        %762 = vmatpush1.msra.mxu0 %v636
        %763 = vmatprep.subr.mxu0 0.0
        %764 = vmatpush1.msra.mxu0 %v591
        %765 = vmatprep.subr.mxu0 0.0
        %766 = vmatpush1.msra.mxu0 %v625
        %767 = vmatprep.subr.mxu0 0.0
        %768 = vmatpush1.msra.mxu0 %v616
        %769 = vmatprep.subr.mxu0 0.0
        %770 = vmatpush1.msra.mxu0 %v607
        %771 = vmatprep.subr.mxu0 0.0
        %772 = vmatpush1.msra.mxu0 %v598
        %773 = vmatprep.subr.mxu0 0.0
        %774 = vmatpush2.msra.mxu0 0.0
        %775 = vmatprep.subr.mxu0 0.0
        %776 = vmatpush2.msra.mxu0 0.0
        %777 = vmatprep.subr.mxu0 0.0
        %778 = vmatpush2.msra.mxu0 0.0
        %779 = vmatprep.subr.mxu0 0.0
        %780 = vmatpush2.msra.mxu0 0.0
        %781 = vmatprep.subr.mxu0 0.0
        %782 = vmatpush2.msra.mxu0 0.0
        %783 = vmatprep.subr.mxu0 0.0
        %784 = vmatpush2.msra.mxu0 0.0
        %785 = vmatprep.subr.mxu0 0.0
        %786 = vmatpush2.msra.mxu0 0.0
        %787 = vmatprep.subr.mxu0 0.0
        %788 = vmatpush2.msra.mxu0 0.0
        %789 = vmatprep.subr.mxu0 0.0
        %790 = vmatpush2.msra.mxu0 0.0
        %791 = vmatprep.subr.mxu0 0.0
        %792 = vmatpush2.msra.mxu0 0.0
        %793 = vmatprep.subr.mxu0 0.0
        %794 = vmatpush2.msra.mxu0 0.0
        %795 = vmatprep.subr.mxu0 0.0
        %796 = vmatpush2.msra.mxu0 0.0
        %797 = vmatprep.subr.mxu0 0.0
        %798 = vmatpush2.msra.mxu0 0.0
        %799 = vmatprep.subr.mxu0 0.0
        %800 = vmatpush2.msra.mxu0 0.0
        %801 = vmatprep.subr.mxu0 0.0
        %802 = vmatpush2.msra.mxu0 0.0
        %803 = vmatprep.subr.mxu0 0.0
        %804 = vmatpush2.msra.mxu0 0.0
        %805 = vmatprep.mubr.f32.mxu0 0.0
        %806 = vmatmul.mubr.f32.gmra.mxu0 %v668
        %v807 = vpop.f32.mrf.mxu0
        %v808 = vadd.f32 %v666, %v807
        %v809 = vpop.f32.mrf.mxu0
        %810 = vdwg.mxu0
        %812 = vset.pattern.permute.xlu0 0
        %813 = vperm.xlu0 %812, %v316
        %v814 = vpop.permute.xlu0 %813
        %v816 = vadd.f32 %v737, %v814
        %v817 = vadd.f32 %v739, %v814
        %v818 = vadd.f32 %v808, %v814
        %v819 = vmul.f32 %v816, %v577
        %v820 = vmul.f32 %v817, %v581
        %v821 = vmul.f32 %v818, %v585
        %s822 = sadd.f32 %s330, 0.0625
        %v823 = vmul.f32 %v819, 0.0625
        %v824 = vmul.f32 %v820, 0.0625
        %v825 = vmul.f32 %v821, 0.0625
        %v826 = vadd.f32 %v326, %v823
        %v827 = vadd.f32 %v327, %v824
        %v828 = vadd.f32 %v328, %v825
        %829 = vrot.lane.b32.xlu0 %v826, 19
        %v830 = vpop.permute.xlu0 %829
        %831 = vrot.lane.b32.xlu0 %v827, 19
        %v832 = vpop.permute.xlu0 %831
        %833 = vrot.lane.b32.xlu0 %v828, 19
        %v834 = vpop.permute.xlu0 %833
        %v835 = vsel %vm339, %v832, %v834
        %v836 = vsel %vm339, %v830, %v832
        %v837 = vsel %vm339, %v834, %v830
        %838 = vrot.lane.b32.xlu0 %v826, 18
        %v839 = vpop.permute.xlu0 %838
        %840 = vrot.lane.b32.xlu0 %v827, 18
        %v841 = vpop.permute.xlu0 %840
        %842 = vrot.lane.b32.xlu0 %v828, 18
        %v843 = vpop.permute.xlu0 %842
        %v844 = vsel %vm349, %v841, %v843
        %v845 = vsel %vm349, %v839, %v841
        %v846 = vsel %vm349, %v843, %v839
        %847 = vrot.lane.b32.xlu0 %v826, 17
        %v848 = vpop.permute.xlu0 %847
        %849 = vrot.lane.b32.xlu0 %v827, 17
        %v850 = vpop.permute.xlu0 %849
        %851 = vrot.lane.b32.xlu0 %v828, 17
        %v852 = vpop.permute.xlu0 %851
        %v853 = vsel %vm359, %v850, %v852
        %v854 = vsel %vm359, %v848, %v850
        %v855 = vsel %vm359, %v852, %v848
        %856 = vrot.lane.b32.xlu0 %v826, 1
        %v857 = vpop.permute.xlu0 %856
        %858 = vrot.lane.b32.xlu0 %v827, 1
        %v859 = vpop.permute.xlu0 %858
        %860 = vrot.lane.b32.xlu0 %v828, 1
        %v861 = vpop.permute.xlu0 %860
        %v862 = vsel %vm369, %v859, %v861
        %v863 = vsel %vm369, %v857, %v859
        %v864 = vsel %vm369, %v861, %v857
        %865 = vrot.lane.b32.xlu0 %v826, 127
        %v866 = vpop.permute.xlu0 %865
        %867 = vrot.lane.b32.xlu0 %v827, 127
        %v868 = vpop.permute.xlu0 %867
        %869 = vrot.lane.b32.xlu0 %v828, 127
        %v870 = vpop.permute.xlu0 %869
        %v871 = vsel %vm379, %v868, %v870
        %v872 = vsel %vm379, %v866, %v868
        %v873 = vsel %vm379, %v870, %v866
        %874 = vrot.lane.b32.xlu0 %v826, 111
        %v875 = vpop.permute.xlu0 %874
        %876 = vrot.lane.b32.xlu0 %v827, 111
        %v877 = vpop.permute.xlu0 %876
        %878 = vrot.lane.b32.xlu0 %v828, 111
        %v879 = vpop.permute.xlu0 %878
        %v880 = vsel %vm389, %v877, %v879
        %v881 = vsel %vm389, %v875, %v877
        %v882 = vsel %vm389, %v879, %v875
        %883 = vrot.lane.b32.xlu0 %v826, 110
        %v884 = vpop.permute.xlu0 %883
        %885 = vrot.lane.b32.xlu0 %v827, 110
        %v886 = vpop.permute.xlu0 %885
        %887 = vrot.lane.b32.xlu0 %v828, 110
        %v888 = vpop.permute.xlu0 %887
        %v889 = vsel %vm399, %v886, %v888
        %v890 = vsel %vm399, %v884, %v886
        %v891 = vsel %vm399, %v888, %v884
        %892 = vrot.lane.b32.xlu0 %v826, 109
        %v893 = vpop.permute.xlu0 %892
        %894 = vrot.lane.b32.xlu0 %v827, 109
        %v895 = vpop.permute.xlu0 %894
        %896 = vrot.lane.b32.xlu0 %v828, 109
        %v897 = vpop.permute.xlu0 %896
        %v898 = vsel %vm409, %v895, %v897
        %v899 = vsel %vm409, %v893, %v895
        %v900 = vsel %vm409, %v897, %v893
        %v901 = vstv %s822
        %v902 = vmul.f32 %v901, %v307
        %v903 = vmul.f32 %v901, %v308
        %v904 = vmul.f32 %v901, %v309
        %905 = vmatprep.subr.mxu0 0.0
        %906 = vmatpush1.msra.mxu0 0.0
        %907 = vmatprep.subr.mxu0 0.0
        %908 = vmatpush1.msra.mxu0 0.0
        %909 = vmatprep.subr.mxu0 0.0
        %910 = vmatpush1.msra.mxu0 0.0
        %911 = vmatprep.subr.mxu0 0.0
        %912 = vmatpush1.msra.mxu0 0.0
        %913 = vmatprep.subr.mxu0 0.0
        %914 = vmatpush1.msra.mxu0 0.0
        %915 = vmatprep.subr.mxu0 0.0
        %916 = vmatpush1.msra.mxu0 0.0
        %917 = vmatprep.subr.mxu0 0.0
        %918 = vmatpush1.msra.mxu0 0.0
        %919 = vmatprep.subr.mxu0 %v898
        %920 = vmatpush1.msra.mxu0 %v899
        %921 = vmatprep.subr.mxu0 %v889
        %922 = vmatpush1.msra.mxu0 %v890
        %923 = vmatprep.subr.mxu0 %v880
        %924 = vmatpush1.msra.mxu0 %v881
        %925 = vmatprep.subr.mxu0 %v871
        %926 = vmatpush1.msra.mxu0 %v872
        %927 = vmatprep.subr.mxu0 %v827
        %928 = vmatpush1.msra.mxu0 %v826
        %929 = vmatprep.subr.mxu0 %v863
        %930 = vmatpush1.msra.mxu0 %v864
        %931 = vmatprep.subr.mxu0 %v854
        %932 = vmatpush1.msra.mxu0 %v855
        %933 = vmatprep.subr.mxu0 %v845
        %934 = vmatpush1.msra.mxu0 %v846
        %935 = vmatprep.subr.mxu0 %v836
        %936 = vmatpush1.msra.mxu0 %v837
        %937 = vmatprep.subr.mxu0 0.0
        %938 = vmatpush2.msra.mxu0 0.0
        %939 = vmatprep.subr.mxu0 0.0
        %940 = vmatpush2.msra.mxu0 0.0
        %941 = vmatprep.subr.mxu0 0.0
        %942 = vmatpush2.msra.mxu0 0.0
        %943 = vmatprep.subr.mxu0 0.0
        %944 = vmatpush2.msra.mxu0 0.0
        %945 = vmatprep.subr.mxu0 0.0
        %946 = vmatpush2.msra.mxu0 0.0
        %947 = vmatprep.subr.mxu0 0.0
        %948 = vmatpush2.msra.mxu0 0.0
        %949 = vmatprep.subr.mxu0 0.0
        %950 = vmatpush2.msra.mxu0 0.0
        %951 = vmatprep.subr.mxu0 0.0
        %952 = vmatpush2.msra.mxu0 0.0
        %953 = vmatprep.subr.mxu0 0.0
        %954 = vmatpush2.msra.mxu0 0.0
        %955 = vmatprep.subr.mxu0 0.0
        %956 = vmatpush2.msra.mxu0 0.0
        %957 = vmatprep.subr.mxu0 0.0
        %958 = vmatpush2.msra.mxu0 0.0
        %959 = vmatprep.subr.mxu0 0.0
        %960 = vmatpush2.msra.mxu0 0.0
        %961 = vmatprep.subr.mxu0 0.0
        %962 = vmatpush2.msra.mxu0 0.0
        %963 = vmatprep.subr.mxu0 0.0
        %964 = vmatpush2.msra.mxu0 0.0
        %965 = vmatprep.subr.mxu0 0.0
        %966 = vmatpush2.msra.mxu0 0.0
        %967 = vmatprep.subr.mxu0 0.0
        %968 = vmatpush2.msra.mxu0 0.0
        %969 = vmatprep.mubr.f32.mxu0 0.0
        %970 = vmatmul.mubr.f32.gmra.mxu0 %v419
        %v971 = vpop.f32.mrf.mxu0
        %v972 = vadd.f32 %v902, %v971
        %v973 = vpop.f32.mrf.mxu0
        %v974 = vadd.f32 %v903, %v973
        %975 = vdwg.mxu0
        %976 = vmatprep.subr.mxu0 0.0
        %977 = vmatpush1.msra.mxu0 0.0
        %978 = vmatprep.subr.mxu0 0.0
        %979 = vmatpush1.msra.mxu0 0.0
        %980 = vmatprep.subr.mxu0 0.0
        %981 = vmatpush1.msra.mxu0 0.0
        %982 = vmatprep.subr.mxu0 0.0
        %983 = vmatpush1.msra.mxu0 0.0
        %984 = vmatprep.subr.mxu0 0.0
        %985 = vmatpush1.msra.mxu0 0.0
        %986 = vmatprep.subr.mxu0 0.0
        %987 = vmatpush1.msra.mxu0 0.0
        %988 = vmatprep.subr.mxu0 0.0
        %989 = vmatpush1.msra.mxu0 0.0
        %990 = vmatprep.subr.mxu0 0.0
        %991 = vmatpush1.msra.mxu0 %v900
        %992 = vmatprep.subr.mxu0 0.0
        %993 = vmatpush1.msra.mxu0 %v891
        %994 = vmatprep.subr.mxu0 0.0
        %995 = vmatpush1.msra.mxu0 %v882
        %996 = vmatprep.subr.mxu0 0.0
        %997 = vmatpush1.msra.mxu0 %v873
        %998 = vmatprep.subr.mxu0 0.0
        %999 = vmatpush1.msra.mxu0 %v828
        %1000 = vmatprep.subr.mxu0 0.0
        %1001 = vmatpush1.msra.mxu0 %v862
        %1002 = vmatprep.subr.mxu0 0.0
        %1003 = vmatpush1.msra.mxu0 %v853
        %1004 = vmatprep.subr.mxu0 0.0
        %1005 = vmatpush1.msra.mxu0 %v844
        %1006 = vmatprep.subr.mxu0 0.0
        %1007 = vmatpush1.msra.mxu0 %v835
        %1008 = vmatprep.subr.mxu0 0.0
        %1009 = vmatpush2.msra.mxu0 0.0
        %1010 = vmatprep.subr.mxu0 0.0
        %1011 = vmatpush2.msra.mxu0 0.0
        %1012 = vmatprep.subr.mxu0 0.0
        %1013 = vmatpush2.msra.mxu0 0.0
        %1014 = vmatprep.subr.mxu0 0.0
        %1015 = vmatpush2.msra.mxu0 0.0
        %1016 = vmatprep.subr.mxu0 0.0
        %1017 = vmatpush2.msra.mxu0 0.0
        %1018 = vmatprep.subr.mxu0 0.0
        %1019 = vmatpush2.msra.mxu0 0.0
        %1020 = vmatprep.subr.mxu0 0.0
        %1021 = vmatpush2.msra.mxu0 0.0
        %1022 = vmatprep.subr.mxu0 0.0
        %1023 = vmatpush2.msra.mxu0 0.0
        %1024 = vmatprep.subr.mxu0 0.0
        %1025 = vmatpush2.msra.mxu0 0.0
        %1026 = vmatprep.subr.mxu0 0.0
        %1027 = vmatpush2.msra.mxu0 0.0
        %1028 = vmatprep.subr.mxu0 0.0
        %1029 = vmatpush2.msra.mxu0 0.0
        %1030 = vmatprep.subr.mxu0 0.0
        %1031 = vmatpush2.msra.mxu0 0.0
        %1032 = vmatprep.subr.mxu0 0.0
        %1033 = vmatpush2.msra.mxu0 0.0
        %1034 = vmatprep.subr.mxu0 0.0
        %1035 = vmatpush2.msra.mxu0 0.0
        %1036 = vmatprep.subr.mxu0 0.0
        %1037 = vmatpush2.msra.mxu0 0.0
        %1038 = vmatprep.subr.mxu0 0.0
        %1039 = vmatpush2.msra.mxu0 0.0
        %1040 = vmatprep.mubr.f32.mxu0 0.0
        %1041 = vmatmul.mubr.f32.gmra.mxu0 %v419
        %v1042 = vpop.f32.mrf.mxu0
        %v1043 = vadd.f32 %v904, %v1042
        %v1044 = vpop.f32.mrf.mxu0
        %1045 = vdwg.mxu0
        %v1046 = vadd.f32 %v972, %v565
        %v1047 = vadd.f32 %v974, %v565
        %v1048 = vadd.f32 %v1043, %v565
        %v1049 = vmax.f32 %v1046, 0.0
        %v1050 = vmax.f32 %v1047, 0.0
        %v1051 = vmax.f32 %v1048, 0.0
        %v1052 = vmul.f32 %v1049, %v577
        %v1053 = vmul.f32 %v1050, %v581
        %v1054 = vmul.f32 %v1051, %v585
        %1055 = vrot.lane.b32.xlu0 %v1052, 19
        %v1056 = vpop.permute.xlu0 %1055
        %1057 = vrot.lane.b32.xlu0 %v1053, 19
        %v1058 = vpop.permute.xlu0 %1057
        %1059 = vrot.lane.b32.xlu0 %v1054, 19
        %v1060 = vpop.permute.xlu0 %1059
        %v1061 = vsel %vm339, %v1058, %v1060
        %v1062 = vsel %vm339, %v1056, %v1058
        %v1063 = vsel %vm339, %v1060, %v1056
        %1064 = vrot.lane.b32.xlu0 %v1052, 18
        %v1065 = vpop.permute.xlu0 %1064
        %1066 = vrot.lane.b32.xlu0 %v1053, 18
        %v1067 = vpop.permute.xlu0 %1066
        %1068 = vrot.lane.b32.xlu0 %v1054, 18
        %v1069 = vpop.permute.xlu0 %1068
        %v1070 = vsel %vm349, %v1067, %v1069
        %v1071 = vsel %vm349, %v1065, %v1067
        %v1072 = vsel %vm349, %v1069, %v1065
        %1073 = vrot.lane.b32.xlu0 %v1052, 17
        %v1074 = vpop.permute.xlu0 %1073
        %1075 = vrot.lane.b32.xlu0 %v1053, 17
        %v1076 = vpop.permute.xlu0 %1075
        %1077 = vrot.lane.b32.xlu0 %v1054, 17
        %v1078 = vpop.permute.xlu0 %1077
        %v1079 = vsel %vm359, %v1076, %v1078
        %v1080 = vsel %vm359, %v1074, %v1076
        %v1081 = vsel %vm359, %v1078, %v1074
        %1082 = vrot.lane.b32.xlu0 %v1052, 1
        %v1083 = vpop.permute.xlu0 %1082
        %1084 = vrot.lane.b32.xlu0 %v1053, 1
        %v1085 = vpop.permute.xlu0 %1084
        %1086 = vrot.lane.b32.xlu0 %v1054, 1
        %v1087 = vpop.permute.xlu0 %1086
        %v1088 = vsel %vm369, %v1085, %v1087
        %v1089 = vsel %vm369, %v1083, %v1085
        %v1090 = vsel %vm369, %v1087, %v1083
        %1091 = vrot.lane.b32.xlu0 %v1052, 127
        %v1092 = vpop.permute.xlu0 %1091
        %1093 = vrot.lane.b32.xlu0 %v1053, 127
        %v1094 = vpop.permute.xlu0 %1093
        %1095 = vrot.lane.b32.xlu0 %v1054, 127
        %v1096 = vpop.permute.xlu0 %1095
        %v1097 = vsel %vm379, %v1094, %v1096
        %v1098 = vsel %vm379, %v1092, %v1094
        %v1099 = vsel %vm379, %v1096, %v1092
        %1100 = vrot.lane.b32.xlu0 %v1052, 111
        %v1101 = vpop.permute.xlu0 %1100
        %1102 = vrot.lane.b32.xlu0 %v1053, 111
        %v1103 = vpop.permute.xlu0 %1102
        %1104 = vrot.lane.b32.xlu0 %v1054, 111
        %v1105 = vpop.permute.xlu0 %1104
        %v1106 = vsel %vm389, %v1103, %v1105
        %v1107 = vsel %vm389, %v1101, %v1103
        %v1108 = vsel %vm389, %v1105, %v1101
        %1109 = vrot.lane.b32.xlu0 %v1052, 110
        %v1110 = vpop.permute.xlu0 %1109
        %1111 = vrot.lane.b32.xlu0 %v1053, 110
        %v1112 = vpop.permute.xlu0 %1111
        %1113 = vrot.lane.b32.xlu0 %v1054, 110
        %v1114 = vpop.permute.xlu0 %1113
        %v1115 = vsel %vm399, %v1112, %v1114
        %v1116 = vsel %vm399, %v1110, %v1112
        %v1117 = vsel %vm399, %v1114, %v1110
        %1118 = vrot.lane.b32.xlu0 %v1052, 109
        %v1119 = vpop.permute.xlu0 %1118
        %1120 = vrot.lane.b32.xlu0 %v1053, 109
        %v1121 = vpop.permute.xlu0 %1120
        %1122 = vrot.lane.b32.xlu0 %v1054, 109
        %v1123 = vpop.permute.xlu0 %1122
        %v1124 = vsel %vm409, %v1121, %v1123
        %v1125 = vsel %vm409, %v1119, %v1121
        %v1126 = vsel %vm409, %v1123, %v1119
        %v1127 = vmul.f32 %v901, %v310
        %v1128 = vmul.f32 %v901, %v311
        %v1129 = vmul.f32 %v901, %v312
        %1130 = vmatprep.subr.mxu0 0.0
        %1131 = vmatpush1.msra.mxu0 0.0
        %1132 = vmatprep.subr.mxu0 0.0
        %1133 = vmatpush1.msra.mxu0 0.0
        %1134 = vmatprep.subr.mxu0 0.0
        %1135 = vmatpush1.msra.mxu0 0.0
        %1136 = vmatprep.subr.mxu0 0.0
        %1137 = vmatpush1.msra.mxu0 0.0
        %1138 = vmatprep.subr.mxu0 0.0
        %1139 = vmatpush1.msra.mxu0 0.0
        %1140 = vmatprep.subr.mxu0 0.0
        %1141 = vmatpush1.msra.mxu0 0.0
        %1142 = vmatprep.subr.mxu0 0.0
        %1143 = vmatpush1.msra.mxu0 0.0
        %1144 = vmatprep.subr.mxu0 %v1124
        %1145 = vmatpush1.msra.mxu0 %v1125
        %1146 = vmatprep.subr.mxu0 %v1115
        %1147 = vmatpush1.msra.mxu0 %v1116
        %1148 = vmatprep.subr.mxu0 %v1106
        %1149 = vmatpush1.msra.mxu0 %v1107
        %1150 = vmatprep.subr.mxu0 %v1097
        %1151 = vmatpush1.msra.mxu0 %v1098
        %1152 = vmatprep.subr.mxu0 %v1053
        %1153 = vmatpush1.msra.mxu0 %v1052
        %1154 = vmatprep.subr.mxu0 %v1089
        %1155 = vmatpush1.msra.mxu0 %v1090
        %1156 = vmatprep.subr.mxu0 %v1080
        %1157 = vmatpush1.msra.mxu0 %v1081
        %1158 = vmatprep.subr.mxu0 %v1071
        %1159 = vmatpush1.msra.mxu0 %v1072
        %1160 = vmatprep.subr.mxu0 %v1062
        %1161 = vmatpush1.msra.mxu0 %v1063
        %1162 = vmatprep.subr.mxu0 0.0
        %1163 = vmatpush2.msra.mxu0 0.0
        %1164 = vmatprep.subr.mxu0 0.0
        %1165 = vmatpush2.msra.mxu0 0.0
        %1166 = vmatprep.subr.mxu0 0.0
        %1167 = vmatpush2.msra.mxu0 0.0
        %1168 = vmatprep.subr.mxu0 0.0
        %1169 = vmatpush2.msra.mxu0 0.0
        %1170 = vmatprep.subr.mxu0 0.0
        %1171 = vmatpush2.msra.mxu0 0.0
        %1172 = vmatprep.subr.mxu0 0.0
        %1173 = vmatpush2.msra.mxu0 0.0
        %1174 = vmatprep.subr.mxu0 0.0
        %1175 = vmatpush2.msra.mxu0 0.0
        %1176 = vmatprep.subr.mxu0 0.0
        %1177 = vmatpush2.msra.mxu0 0.0
        %1178 = vmatprep.subr.mxu0 0.0
        %1179 = vmatpush2.msra.mxu0 0.0
        %1180 = vmatprep.subr.mxu0 0.0
        %1181 = vmatpush2.msra.mxu0 0.0
        %1182 = vmatprep.subr.mxu0 0.0
        %1183 = vmatpush2.msra.mxu0 0.0
        %1184 = vmatprep.subr.mxu0 0.0
        %1185 = vmatpush2.msra.mxu0 0.0
        %1186 = vmatprep.subr.mxu0 0.0
        %1187 = vmatpush2.msra.mxu0 0.0
        %1188 = vmatprep.subr.mxu0 0.0
        %1189 = vmatpush2.msra.mxu0 0.0
        %1190 = vmatprep.subr.mxu0 0.0
        %1191 = vmatpush2.msra.mxu0 0.0
        %1192 = vmatprep.subr.mxu0 0.0
        %1193 = vmatpush2.msra.mxu0 0.0
        %1194 = vmatprep.mubr.f32.mxu0 0.0
        %1195 = vmatmul.mubr.f32.gmra.mxu0 %v668
        %v1196 = vpop.f32.mrf.mxu0
        %v1197 = vadd.f32 %v1127, %v1196
        %v1198 = vpop.f32.mrf.mxu0
        %v1199 = vadd.f32 %v1128, %v1198
        %1200 = vdwg.mxu0
        %1201 = vmatprep.subr.mxu0 0.0
        %1202 = vmatpush1.msra.mxu0 0.0
        %1203 = vmatprep.subr.mxu0 0.0
        %1204 = vmatpush1.msra.mxu0 0.0
        %1205 = vmatprep.subr.mxu0 0.0
        %1206 = vmatpush1.msra.mxu0 0.0
        %1207 = vmatprep.subr.mxu0 0.0
        %1208 = vmatpush1.msra.mxu0 0.0
        %1209 = vmatprep.subr.mxu0 0.0
        %1210 = vmatpush1.msra.mxu0 0.0
        %1211 = vmatprep.subr.mxu0 0.0
        %1212 = vmatpush1.msra.mxu0 0.0
        %1213 = vmatprep.subr.mxu0 0.0
        %1214 = vmatpush1.msra.mxu0 0.0
        %1215 = vmatprep.subr.mxu0 0.0
        %1216 = vmatpush1.msra.mxu0 %v1126
        %1217 = vmatprep.subr.mxu0 0.0
        %1218 = vmatpush1.msra.mxu0 %v1117
        %1219 = vmatprep.subr.mxu0 0.0
        %1220 = vmatpush1.msra.mxu0 %v1108
        %1221 = vmatprep.subr.mxu0 0.0
        %1222 = vmatpush1.msra.mxu0 %v1099
        %1223 = vmatprep.subr.mxu0 0.0
        %1224 = vmatpush1.msra.mxu0 %v1054
        %1225 = vmatprep.subr.mxu0 0.0
        %1226 = vmatpush1.msra.mxu0 %v1088
        %1227 = vmatprep.subr.mxu0 0.0
        %1228 = vmatpush1.msra.mxu0 %v1079
        %1229 = vmatprep.subr.mxu0 0.0
        %1230 = vmatpush1.msra.mxu0 %v1070
        %1231 = vmatprep.subr.mxu0 0.0
        %1232 = vmatpush1.msra.mxu0 %v1061
        %1233 = vmatprep.subr.mxu0 0.0
        %1234 = vmatpush2.msra.mxu0 0.0
        %1235 = vmatprep.subr.mxu0 0.0
        %1236 = vmatpush2.msra.mxu0 0.0
        %1237 = vmatprep.subr.mxu0 0.0
        %1238 = vmatpush2.msra.mxu0 0.0
        %1239 = vmatprep.subr.mxu0 0.0
        %1240 = vmatpush2.msra.mxu0 0.0
        %1241 = vmatprep.subr.mxu0 0.0
        %1242 = vmatpush2.msra.mxu0 0.0
        %1243 = vmatprep.subr.mxu0 0.0
        %1244 = vmatpush2.msra.mxu0 0.0
        %1245 = vmatprep.subr.mxu0 0.0
        %1246 = vmatpush2.msra.mxu0 0.0
        %1247 = vmatprep.subr.mxu0 0.0
        %1248 = vmatpush2.msra.mxu0 0.0
        %1249 = vmatprep.subr.mxu0 0.0
        %1250 = vmatpush2.msra.mxu0 0.0
        %1251 = vmatprep.subr.mxu0 0.0
        %1252 = vmatpush2.msra.mxu0 0.0
        %1253 = vmatprep.subr.mxu0 0.0
        %1254 = vmatpush2.msra.mxu0 0.0
        %1255 = vmatprep.subr.mxu0 0.0
        %1256 = vmatpush2.msra.mxu0 0.0
        %1257 = vmatprep.subr.mxu0 0.0
        %1258 = vmatpush2.msra.mxu0 0.0
        %1259 = vmatprep.subr.mxu0 0.0
        %1260 = vmatpush2.msra.mxu0 0.0
        %1261 = vmatprep.subr.mxu0 0.0
        %1262 = vmatpush2.msra.mxu0 0.0
        %1263 = vmatprep.subr.mxu0 0.0
        %1264 = vmatpush2.msra.mxu0 0.0
        %1265 = vmatprep.mubr.f32.mxu0 0.0
        %1266 = vmatmul.mubr.f32.gmra.mxu0 %v668
        %v1267 = vpop.f32.mrf.mxu0
        %v1268 = vadd.f32 %v1129, %v1267
        %v1269 = vpop.f32.mrf.mxu0
        %1270 = vdwg.mxu0
        %v1271 = vadd.f32 %v1197, %v814
        %v1272 = vadd.f32 %v1199, %v814
        %v1273 = vadd.f32 %v1268, %v814
        %v1274 = vmul.f32 %v1271, %v577
        %v1275 = vmul.f32 %v1272, %v581
        %v1276 = vmul.f32 %v1273, %v585
        %v1277 = vmul.f32 %v1274, 0.0625
        %v1278 = vmul.f32 %v1275, 0.0625
        %v1279 = vmul.f32 %v1276, 0.0625
        %v1280 = vadd.f32 %v326, %v1277
        %v1281 = vadd.f32 %v327, %v1278
        %v1282 = vadd.f32 %v328, %v1279
        %1283 = vrot.lane.b32.xlu0 %v1280, 19
        %v1284 = vpop.permute.xlu0 %1283
        %1285 = vrot.lane.b32.xlu0 %v1281, 19
        %v1286 = vpop.permute.xlu0 %1285
        %1287 = vrot.lane.b32.xlu0 %v1282, 19
        %v1288 = vpop.permute.xlu0 %1287
        %v1289 = vsel %vm339, %v1286, %v1288
        %v1290 = vsel %vm339, %v1284, %v1286
        %v1291 = vsel %vm339, %v1288, %v1284
        %1292 = vrot.lane.b32.xlu0 %v1280, 18
        %v1293 = vpop.permute.xlu0 %1292
        %1294 = vrot.lane.b32.xlu0 %v1281, 18
        %v1295 = vpop.permute.xlu0 %1294
        %1296 = vrot.lane.b32.xlu0 %v1282, 18
        %v1297 = vpop.permute.xlu0 %1296
        %v1298 = vsel %vm349, %v1295, %v1297
        %v1299 = vsel %vm349, %v1293, %v1295
        %v1300 = vsel %vm349, %v1297, %v1293
        %1301 = vrot.lane.b32.xlu0 %v1280, 17
        %v1302 = vpop.permute.xlu0 %1301
        %1303 = vrot.lane.b32.xlu0 %v1281, 17
        %v1304 = vpop.permute.xlu0 %1303
        %1305 = vrot.lane.b32.xlu0 %v1282, 17
        %v1306 = vpop.permute.xlu0 %1305
        %v1307 = vsel %vm359, %v1304, %v1306
        %v1308 = vsel %vm359, %v1302, %v1304
        %v1309 = vsel %vm359, %v1306, %v1302
        %1310 = vrot.lane.b32.xlu0 %v1280, 1
        %v1311 = vpop.permute.xlu0 %1310
        %1312 = vrot.lane.b32.xlu0 %v1281, 1
        %v1313 = vpop.permute.xlu0 %1312
        %1314 = vrot.lane.b32.xlu0 %v1282, 1
        %v1315 = vpop.permute.xlu0 %1314
        %v1316 = vsel %vm369, %v1313, %v1315
        %v1317 = vsel %vm369, %v1311, %v1313
        %v1318 = vsel %vm369, %v1315, %v1311
        %1319 = vrot.lane.b32.xlu0 %v1280, 127
        %v1320 = vpop.permute.xlu0 %1319
        %1321 = vrot.lane.b32.xlu0 %v1281, 127
        %v1322 = vpop.permute.xlu0 %1321
        %1323 = vrot.lane.b32.xlu0 %v1282, 127
        %v1324 = vpop.permute.xlu0 %1323
        %v1325 = vsel %vm379, %v1322, %v1324
        %v1326 = vsel %vm379, %v1320, %v1322
        %v1327 = vsel %vm379, %v1324, %v1320
        %1328 = vrot.lane.b32.xlu0 %v1280, 111
        %v1329 = vpop.permute.xlu0 %1328
        %1330 = vrot.lane.b32.xlu0 %v1281, 111
        %v1331 = vpop.permute.xlu0 %1330
        %1332 = vrot.lane.b32.xlu0 %v1282, 111
        %v1333 = vpop.permute.xlu0 %1332
        %v1334 = vsel %vm389, %v1331, %v1333
        %v1335 = vsel %vm389, %v1329, %v1331
        %v1336 = vsel %vm389, %v1333, %v1329
        %1337 = vrot.lane.b32.xlu0 %v1280, 110
        %v1338 = vpop.permute.xlu0 %1337
        %1339 = vrot.lane.b32.xlu0 %v1281, 110
        %v1340 = vpop.permute.xlu0 %1339
        %1341 = vrot.lane.b32.xlu0 %v1282, 110
        %v1342 = vpop.permute.xlu0 %1341
        %v1343 = vsel %vm399, %v1340, %v1342
        %v1344 = vsel %vm399, %v1338, %v1340
        %v1345 = vsel %vm399, %v1342, %v1338
        %1346 = vrot.lane.b32.xlu0 %v1280, 109
        %v1347 = vpop.permute.xlu0 %1346
        %1348 = vrot.lane.b32.xlu0 %v1281, 109
        %v1349 = vpop.permute.xlu0 %1348
        %1350 = vrot.lane.b32.xlu0 %v1282, 109
        %v1351 = vpop.permute.xlu0 %1350
        %v1352 = vsel %vm409, %v1349, %v1351
        %v1353 = vsel %vm409, %v1347, %v1349
        %v1354 = vsel %vm409, %v1351, %v1347
        %1355 = vmatprep.subr.mxu0 0.0
        %1356 = vmatpush1.msra.mxu0 0.0
        %1357 = vmatprep.subr.mxu0 0.0
        %1358 = vmatpush1.msra.mxu0 0.0
        %1359 = vmatprep.subr.mxu0 0.0
        %1360 = vmatpush1.msra.mxu0 0.0
        %1361 = vmatprep.subr.mxu0 0.0
        %1362 = vmatpush1.msra.mxu0 0.0
        %1363 = vmatprep.subr.mxu0 0.0
        %1364 = vmatpush1.msra.mxu0 0.0
        %1365 = vmatprep.subr.mxu0 0.0
        %1366 = vmatpush1.msra.mxu0 0.0
        %1367 = vmatprep.subr.mxu0 0.0
        %1368 = vmatpush1.msra.mxu0 0.0
        %1369 = vmatprep.subr.mxu0 %v1352
        %1370 = vmatpush1.msra.mxu0 %v1353
        %1371 = vmatprep.subr.mxu0 %v1343
        %1372 = vmatpush1.msra.mxu0 %v1344
        %1373 = vmatprep.subr.mxu0 %v1334
        %1374 = vmatpush1.msra.mxu0 %v1335
        %1375 = vmatprep.subr.mxu0 %v1325
        %1376 = vmatpush1.msra.mxu0 %v1326
        %1377 = vmatprep.subr.mxu0 %v1281
        %1378 = vmatpush1.msra.mxu0 %v1280
        %1379 = vmatprep.subr.mxu0 %v1317
        %1380 = vmatpush1.msra.mxu0 %v1318
        %1381 = vmatprep.subr.mxu0 %v1308
        %1382 = vmatpush1.msra.mxu0 %v1309
        %1383 = vmatprep.subr.mxu0 %v1299
        %1384 = vmatpush1.msra.mxu0 %v1300
        %1385 = vmatprep.subr.mxu0 %v1290
        %1386 = vmatpush1.msra.mxu0 %v1291
        %1387 = vmatprep.subr.mxu0 0.0
        %1388 = vmatpush2.msra.mxu0 0.0
        %1389 = vmatprep.subr.mxu0 0.0
        %1390 = vmatpush2.msra.mxu0 0.0
        %1391 = vmatprep.subr.mxu0 0.0
        %1392 = vmatpush2.msra.mxu0 0.0
        %1393 = vmatprep.subr.mxu0 0.0
        %1394 = vmatpush2.msra.mxu0 0.0
        %1395 = vmatprep.subr.mxu0 0.0
        %1396 = vmatpush2.msra.mxu0 0.0
        %1397 = vmatprep.subr.mxu0 0.0
        %1398 = vmatpush2.msra.mxu0 0.0
        %1399 = vmatprep.subr.mxu0 0.0
        %1400 = vmatpush2.msra.mxu0 0.0
        %1401 = vmatprep.subr.mxu0 0.0
        %1402 = vmatpush2.msra.mxu0 0.0
        %1403 = vmatprep.subr.mxu0 0.0
        %1404 = vmatpush2.msra.mxu0 0.0
        %1405 = vmatprep.subr.mxu0 0.0
        %1406 = vmatpush2.msra.mxu0 0.0
        %1407 = vmatprep.subr.mxu0 0.0
        %1408 = vmatpush2.msra.mxu0 0.0
        %1409 = vmatprep.subr.mxu0 0.0
        %1410 = vmatpush2.msra.mxu0 0.0
        %1411 = vmatprep.subr.mxu0 0.0
        %1412 = vmatpush2.msra.mxu0 0.0
        %1413 = vmatprep.subr.mxu0 0.0
        %1414 = vmatpush2.msra.mxu0 0.0
        %1415 = vmatprep.subr.mxu0 0.0
        %1416 = vmatpush2.msra.mxu0 0.0
        %1417 = vmatprep.subr.mxu0 0.0
        %1418 = vmatpush2.msra.mxu0 0.0
        %1419 = vmatprep.mubr.f32.mxu0 0.0
        %1420 = vmatmul.mubr.f32.gmra.mxu0 %v419
        %v1421 = vpop.f32.mrf.mxu0
        %v1422 = vadd.f32 %v902, %v1421
        %v1423 = vpop.f32.mrf.mxu0
        %v1424 = vadd.f32 %v903, %v1423
        %1425 = vdwg.mxu0
        %1426 = vmatprep.subr.mxu0 0.0
        %1427 = vmatpush1.msra.mxu0 0.0
        %1428 = vmatprep.subr.mxu0 0.0
        %1429 = vmatpush1.msra.mxu0 0.0
        %1430 = vmatprep.subr.mxu0 0.0
        %1431 = vmatpush1.msra.mxu0 0.0
        %1432 = vmatprep.subr.mxu0 0.0
        %1433 = vmatpush1.msra.mxu0 0.0
        %1434 = vmatprep.subr.mxu0 0.0
        %1435 = vmatpush1.msra.mxu0 0.0
        %1436 = vmatprep.subr.mxu0 0.0
        %1437 = vmatpush1.msra.mxu0 0.0
        %1438 = vmatprep.subr.mxu0 0.0
        %1439 = vmatpush1.msra.mxu0 0.0
        %1440 = vmatprep.subr.mxu0 0.0
        %1441 = vmatpush1.msra.mxu0 %v1354
        %1442 = vmatprep.subr.mxu0 0.0
        %1443 = vmatpush1.msra.mxu0 %v1345
        %1444 = vmatprep.subr.mxu0 0.0
        %1445 = vmatpush1.msra.mxu0 %v1336
        %1446 = vmatprep.subr.mxu0 0.0
        %1447 = vmatpush1.msra.mxu0 %v1327
        %1448 = vmatprep.subr.mxu0 0.0
        %1449 = vmatpush1.msra.mxu0 %v1282
        %1450 = vmatprep.subr.mxu0 0.0
        %1451 = vmatpush1.msra.mxu0 %v1316
        %1452 = vmatprep.subr.mxu0 0.0
        %1453 = vmatpush1.msra.mxu0 %v1307
        %1454 = vmatprep.subr.mxu0 0.0
        %1455 = vmatpush1.msra.mxu0 %v1298
        %1456 = vmatprep.subr.mxu0 0.0
        %1457 = vmatpush1.msra.mxu0 %v1289
        %1458 = vmatprep.subr.mxu0 0.0
        %1459 = vmatpush2.msra.mxu0 0.0
        %1460 = vmatprep.subr.mxu0 0.0
        %1461 = vmatpush2.msra.mxu0 0.0
        %1462 = vmatprep.subr.mxu0 0.0
        %1463 = vmatpush2.msra.mxu0 0.0
        %1464 = vmatprep.subr.mxu0 0.0
        %1465 = vmatpush2.msra.mxu0 0.0
        %1466 = vmatprep.subr.mxu0 0.0
        %1467 = vmatpush2.msra.mxu0 0.0
        %1468 = vmatprep.subr.mxu0 0.0
        %1469 = vmatpush2.msra.mxu0 0.0
        %1470 = vmatprep.subr.mxu0 0.0
        %1471 = vmatpush2.msra.mxu0 0.0
        %1472 = vmatprep.subr.mxu0 0.0
        %1473 = vmatpush2.msra.mxu0 0.0
        %1474 = vmatprep.subr.mxu0 0.0
        %1475 = vmatpush2.msra.mxu0 0.0
        %1476 = vmatprep.subr.mxu0 0.0
        %1477 = vmatpush2.msra.mxu0 0.0
        %1478 = vmatprep.subr.mxu0 0.0
        %1479 = vmatpush2.msra.mxu0 0.0
        %1480 = vmatprep.subr.mxu0 0.0
        %1481 = vmatpush2.msra.mxu0 0.0
        %1482 = vmatprep.subr.mxu0 0.0
        %1483 = vmatpush2.msra.mxu0 0.0
        %1484 = vmatprep.subr.mxu0 0.0
        %1485 = vmatpush2.msra.mxu0 0.0
        %1486 = vmatprep.subr.mxu0 0.0
        %1487 = vmatpush2.msra.mxu0 0.0
        %1488 = vmatprep.subr.mxu0 0.0
        %1489 = vmatpush2.msra.mxu0 0.0
        %1490 = vmatprep.mubr.f32.mxu0 0.0
        %1491 = vmatmul.mubr.f32.gmra.mxu0 %v419
        %v1492 = vpop.f32.mrf.mxu0
        %v1493 = vadd.f32 %v904, %v1492
        %v1494 = vpop.f32.mrf.mxu0
        %1495 = vdwg.mxu0
        %v1496 = vadd.f32 %v1422, %v565
        %v1497 = vadd.f32 %v1424, %v565
        %v1498 = vadd.f32 %v1493, %v565
        %v1499 = vmax.f32 %v1496, 0.0
        %v1500 = vmax.f32 %v1497, 0.0
        %v1501 = vmax.f32 %v1498, 0.0
        %v1502 = vmul.f32 %v1499, %v577
        %v1503 = vmul.f32 %v1500, %v581
        %v1504 = vmul.f32 %v1501, %v585
        %1505 = vrot.lane.b32.xlu0 %v1502, 19
        %v1506 = vpop.permute.xlu0 %1505
        %1507 = vrot.lane.b32.xlu0 %v1503, 19
        %v1508 = vpop.permute.xlu0 %1507
        %1509 = vrot.lane.b32.xlu0 %v1504, 19
        %v1510 = vpop.permute.xlu0 %1509
        %v1511 = vsel %vm339, %v1508, %v1510
        %v1512 = vsel %vm339, %v1506, %v1508
        %v1513 = vsel %vm339, %v1510, %v1506
        %1514 = vrot.lane.b32.xlu0 %v1502, 18
        %v1515 = vpop.permute.xlu0 %1514
        %1516 = vrot.lane.b32.xlu0 %v1503, 18
        %v1517 = vpop.permute.xlu0 %1516
        %1518 = vrot.lane.b32.xlu0 %v1504, 18
        %v1519 = vpop.permute.xlu0 %1518
        %v1520 = vsel %vm349, %v1517, %v1519
        %v1521 = vsel %vm349, %v1515, %v1517
        %v1522 = vsel %vm349, %v1519, %v1515
        %1523 = vrot.lane.b32.xlu0 %v1502, 17
        %v1524 = vpop.permute.xlu0 %1523
        %1525 = vrot.lane.b32.xlu0 %v1503, 17
        %v1526 = vpop.permute.xlu0 %1525
        %1527 = vrot.lane.b32.xlu0 %v1504, 17
        %v1528 = vpop.permute.xlu0 %1527
        %v1529 = vsel %vm359, %v1526, %v1528
        %v1530 = vsel %vm359, %v1524, %v1526
        %v1531 = vsel %vm359, %v1528, %v1524
        %1532 = vrot.lane.b32.xlu0 %v1502, 1
        %v1533 = vpop.permute.xlu0 %1532
        %1534 = vrot.lane.b32.xlu0 %v1503, 1
        %v1535 = vpop.permute.xlu0 %1534
        %1536 = vrot.lane.b32.xlu0 %v1504, 1
        %v1537 = vpop.permute.xlu0 %1536
        %v1538 = vsel %vm369, %v1535, %v1537
        %v1539 = vsel %vm369, %v1533, %v1535
        %v1540 = vsel %vm369, %v1537, %v1533
        %1541 = vrot.lane.b32.xlu0 %v1502, 127
        %v1542 = vpop.permute.xlu0 %1541
        %1543 = vrot.lane.b32.xlu0 %v1503, 127
        %v1544 = vpop.permute.xlu0 %1543
        %1545 = vrot.lane.b32.xlu0 %v1504, 127
        %v1546 = vpop.permute.xlu0 %1545
        %v1547 = vsel %vm379, %v1544, %v1546
        %v1548 = vsel %vm379, %v1542, %v1544
        %v1549 = vsel %vm379, %v1546, %v1542
        %1550 = vrot.lane.b32.xlu0 %v1502, 111
        %v1551 = vpop.permute.xlu0 %1550
        %1552 = vrot.lane.b32.xlu0 %v1503, 111
        %v1553 = vpop.permute.xlu0 %1552
        %1554 = vrot.lane.b32.xlu0 %v1504, 111
        %v1555 = vpop.permute.xlu0 %1554
        %v1556 = vsel %vm389, %v1553, %v1555
        %v1557 = vsel %vm389, %v1551, %v1553
        %v1558 = vsel %vm389, %v1555, %v1551
        %1559 = vrot.lane.b32.xlu0 %v1502, 110
        %v1560 = vpop.permute.xlu0 %1559
        %1561 = vrot.lane.b32.xlu0 %v1503, 110
        %v1562 = vpop.permute.xlu0 %1561
        %1563 = vrot.lane.b32.xlu0 %v1504, 110
        %v1564 = vpop.permute.xlu0 %1563
        %v1565 = vsel %vm399, %v1562, %v1564
        %v1566 = vsel %vm399, %v1560, %v1562
        %v1567 = vsel %vm399, %v1564, %v1560
        %1568 = vrot.lane.b32.xlu0 %v1502, 109
        %v1569 = vpop.permute.xlu0 %1568
        %1570 = vrot.lane.b32.xlu0 %v1503, 109
        %v1571 = vpop.permute.xlu0 %1570
        %1572 = vrot.lane.b32.xlu0 %v1504, 109
        %v1573 = vpop.permute.xlu0 %1572
        %v1574 = vsel %vm409, %v1571, %v1573
        %v1575 = vsel %vm409, %v1569, %v1571
        %v1576 = vsel %vm409, %v1573, %v1569
        %1577 = vmatprep.subr.mxu0 0.0
        %1578 = vmatpush1.msra.mxu0 0.0
        %1579 = vmatprep.subr.mxu0 0.0
        %1580 = vmatpush1.msra.mxu0 0.0
        %1581 = vmatprep.subr.mxu0 0.0
        %1582 = vmatpush1.msra.mxu0 0.0
        %1583 = vmatprep.subr.mxu0 0.0
        %1584 = vmatpush1.msra.mxu0 0.0
        %1585 = vmatprep.subr.mxu0 0.0
        %1586 = vmatpush1.msra.mxu0 0.0
        %1587 = vmatprep.subr.mxu0 0.0
        %1588 = vmatpush1.msra.mxu0 0.0
        %1589 = vmatprep.subr.mxu0 0.0
        %1590 = vmatpush1.msra.mxu0 0.0
        %1591 = vmatprep.subr.mxu0 %v1574
        %1592 = vmatpush1.msra.mxu0 %v1575
        %1593 = vmatprep.subr.mxu0 %v1565
        %1594 = vmatpush1.msra.mxu0 %v1566
        %1595 = vmatprep.subr.mxu0 %v1556
        %1596 = vmatpush1.msra.mxu0 %v1557
        %1597 = vmatprep.subr.mxu0 %v1547
        %1598 = vmatpush1.msra.mxu0 %v1548
        %1599 = vmatprep.subr.mxu0 %v1503
        %1600 = vmatpush1.msra.mxu0 %v1502
        %1601 = vmatprep.subr.mxu0 %v1539
        %1602 = vmatpush1.msra.mxu0 %v1540
        %1603 = vmatprep.subr.mxu0 %v1530
        %1604 = vmatpush1.msra.mxu0 %v1531
        %1605 = vmatprep.subr.mxu0 %v1521
        %1606 = vmatpush1.msra.mxu0 %v1522
        %1607 = vmatprep.subr.mxu0 %v1512
        %1608 = vmatpush1.msra.mxu0 %v1513
        %1609 = vmatprep.subr.mxu0 0.0
        %1610 = vmatpush2.msra.mxu0 0.0
        %1611 = vmatprep.subr.mxu0 0.0
        %1612 = vmatpush2.msra.mxu0 0.0
        %1613 = vmatprep.subr.mxu0 0.0
        %1614 = vmatpush2.msra.mxu0 0.0
        %1615 = vmatprep.subr.mxu0 0.0
        %1616 = vmatpush2.msra.mxu0 0.0
        %1617 = vmatprep.subr.mxu0 0.0
        %1618 = vmatpush2.msra.mxu0 0.0
        %1619 = vmatprep.subr.mxu0 0.0
        %1620 = vmatpush2.msra.mxu0 0.0
        %1621 = vmatprep.subr.mxu0 0.0
        %1622 = vmatpush2.msra.mxu0 0.0
        %1623 = vmatprep.subr.mxu0 0.0
        %1624 = vmatpush2.msra.mxu0 0.0
        %1625 = vmatprep.subr.mxu0 0.0
        %1626 = vmatpush2.msra.mxu0 0.0
        %1627 = vmatprep.subr.mxu0 0.0
        %1628 = vmatpush2.msra.mxu0 0.0
        %1629 = vmatprep.subr.mxu0 0.0
        %1630 = vmatpush2.msra.mxu0 0.0
        %1631 = vmatprep.subr.mxu0 0.0
        %1632 = vmatpush2.msra.mxu0 0.0
        %1633 = vmatprep.subr.mxu0 0.0
        %1634 = vmatpush2.msra.mxu0 0.0
        %1635 = vmatprep.subr.mxu0 0.0
        %1636 = vmatpush2.msra.mxu0 0.0
        %1637 = vmatprep.subr.mxu0 0.0
        %1638 = vmatpush2.msra.mxu0 0.0
        %1639 = vmatprep.subr.mxu0 0.0
        %1640 = vmatpush2.msra.mxu0 0.0
        %1641 = vmatprep.mubr.f32.mxu0 0.0
        %1642 = vmatmul.mubr.f32.gmra.mxu0 %v668
        %v1643 = vpop.f32.mrf.mxu0
        %v1644 = vadd.f32 %v1127, %v1643
        %v1645 = vpop.f32.mrf.mxu0
        %v1646 = vadd.f32 %v1128, %v1645
        %1647 = vdwg.mxu0
        %1648 = vmatprep.subr.mxu0 0.0
        %1649 = vmatpush1.msra.mxu0 0.0
        %1650 = vmatprep.subr.mxu0 0.0
        %1651 = vmatpush1.msra.mxu0 0.0
        %1652 = vmatprep.subr.mxu0 0.0
        %1653 = vmatpush1.msra.mxu0 0.0
        %1654 = vmatprep.subr.mxu0 0.0
        %1655 = vmatpush1.msra.mxu0 0.0
        %1656 = vmatprep.subr.mxu0 0.0
        %1657 = vmatpush1.msra.mxu0 0.0
        %1658 = vmatprep.subr.mxu0 0.0
        %1659 = vmatpush1.msra.mxu0 0.0
        %1660 = vmatprep.subr.mxu0 0.0
        %1661 = vmatpush1.msra.mxu0 0.0
        %1662 = vmatprep.subr.mxu0 0.0
        %1663 = vmatpush1.msra.mxu0 %v1576
        %1664 = vmatprep.subr.mxu0 0.0
        %1665 = vmatpush1.msra.mxu0 %v1567
        %1666 = vmatprep.subr.mxu0 0.0
        %1667 = vmatpush1.msra.mxu0 %v1558
        %1668 = vmatprep.subr.mxu0 0.0
        %1669 = vmatpush1.msra.mxu0 %v1549
        %1670 = vmatprep.subr.mxu0 0.0
        %1671 = vmatpush1.msra.mxu0 %v1504
        %1672 = vmatprep.subr.mxu0 0.0
        %1673 = vmatpush1.msra.mxu0 %v1538
        %1674 = vmatprep.subr.mxu0 0.0
        %1675 = vmatpush1.msra.mxu0 %v1529
        %1676 = vmatprep.subr.mxu0 0.0
        %1677 = vmatpush1.msra.mxu0 %v1520
        %1678 = vmatprep.subr.mxu0 0.0
        %1679 = vmatpush1.msra.mxu0 %v1511
        %1680 = vmatprep.subr.mxu0 0.0
        %1681 = vmatpush2.msra.mxu0 0.0
        %1682 = vmatprep.subr.mxu0 0.0
        %1683 = vmatpush2.msra.mxu0 0.0
        %1684 = vmatprep.subr.mxu0 0.0
        %1685 = vmatpush2.msra.mxu0 0.0
        %1686 = vmatprep.subr.mxu0 0.0
        %1687 = vmatpush2.msra.mxu0 0.0
        %1688 = vmatprep.subr.mxu0 0.0
        %1689 = vmatpush2.msra.mxu0 0.0
        %1690 = vmatprep.subr.mxu0 0.0
        %1691 = vmatpush2.msra.mxu0 0.0
        %1692 = vmatprep.subr.mxu0 0.0
        %1693 = vmatpush2.msra.mxu0 0.0
        %1694 = vmatprep.subr.mxu0 0.0
        %1695 = vmatpush2.msra.mxu0 0.0
        %1696 = vmatprep.subr.mxu0 0.0
        %1697 = vmatpush2.msra.mxu0 0.0
        %1698 = vmatprep.subr.mxu0 0.0
        %1699 = vmatpush2.msra.mxu0 0.0
        %1700 = vmatprep.subr.mxu0 0.0
        %1701 = vmatpush2.msra.mxu0 0.0
        %1702 = vmatprep.subr.mxu0 0.0
        %1703 = vmatpush2.msra.mxu0 0.0
        %1704 = vmatprep.subr.mxu0 0.0
        %1705 = vmatpush2.msra.mxu0 0.0
        %1706 = vmatprep.subr.mxu0 0.0
        %1707 = vmatpush2.msra.mxu0 0.0
        %1708 = vmatprep.subr.mxu0 0.0
        %1709 = vmatpush2.msra.mxu0 0.0
        %1710 = vmatprep.subr.mxu0 0.0
        %1711 = vmatpush2.msra.mxu0 0.0
        %1712 = vmatprep.mubr.f32.mxu0 0.0
        %1713 = vmatmul.mubr.f32.gmra.mxu0 %v668
        %v1714 = vpop.f32.mrf.mxu0
        %v1715 = vadd.f32 %v1129, %v1714
        %v1716 = vpop.f32.mrf.mxu0
        %1717 = vdwg.mxu0
        %v1718 = vadd.f32 %v1644, %v814
        %v1719 = vadd.f32 %v1646, %v814
        %v1720 = vadd.f32 %v1715, %v814
        %v1721 = vmul.f32 %v1718, %v577
        %v1722 = vmul.f32 %v1719, %v581
        %v1723 = vmul.f32 %v1720, %v585
        %s1724 = sadd.f32 %s330, 0.125
        %v1725 = vmul.f32 %v1721, 0.125
        %v1726 = vmul.f32 %v1722, 0.125
        %v1727 = vmul.f32 %v1723, 0.125
        %v1728 = vadd.f32 %v326, %v1725
        %v1729 = vadd.f32 %v327, %v1726
        %v1730 = vadd.f32 %v328, %v1727
        %1731 = vrot.lane.b32.xlu0 %v1728, 19
        %v1732 = vpop.permute.xlu0 %1731
        %1733 = vrot.lane.b32.xlu0 %v1729, 19
        %v1734 = vpop.permute.xlu0 %1733
        %1735 = vrot.lane.b32.xlu0 %v1730, 19
        %v1736 = vpop.permute.xlu0 %1735
        %v1737 = vsel %vm339, %v1734, %v1736
        %v1738 = vsel %vm339, %v1732, %v1734
        %v1739 = vsel %vm339, %v1736, %v1732
        %1740 = vrot.lane.b32.xlu0 %v1728, 18
        %v1741 = vpop.permute.xlu0 %1740
        %1742 = vrot.lane.b32.xlu0 %v1729, 18
        %v1743 = vpop.permute.xlu0 %1742
        %1744 = vrot.lane.b32.xlu0 %v1730, 18
        %v1745 = vpop.permute.xlu0 %1744
        %v1746 = vsel %vm349, %v1743, %v1745
        %v1747 = vsel %vm349, %v1741, %v1743
        %v1748 = vsel %vm349, %v1745, %v1741
        %1749 = vrot.lane.b32.xlu0 %v1728, 17
        %v1750 = vpop.permute.xlu0 %1749
        %1751 = vrot.lane.b32.xlu0 %v1729, 17
        %v1752 = vpop.permute.xlu0 %1751
        %1753 = vrot.lane.b32.xlu0 %v1730, 17
        %v1754 = vpop.permute.xlu0 %1753
        %v1755 = vsel %vm359, %v1752, %v1754
        %v1756 = vsel %vm359, %v1750, %v1752
        %v1757 = vsel %vm359, %v1754, %v1750
        %1758 = vrot.lane.b32.xlu0 %v1728, 1
        %v1759 = vpop.permute.xlu0 %1758
        %1760 = vrot.lane.b32.xlu0 %v1729, 1
        %v1761 = vpop.permute.xlu0 %1760
        %1762 = vrot.lane.b32.xlu0 %v1730, 1
        %v1763 = vpop.permute.xlu0 %1762
        %v1764 = vsel %vm369, %v1761, %v1763
        %v1765 = vsel %vm369, %v1759, %v1761
        %v1766 = vsel %vm369, %v1763, %v1759
        %1767 = vrot.lane.b32.xlu0 %v1728, 127
        %v1768 = vpop.permute.xlu0 %1767
        %1769 = vrot.lane.b32.xlu0 %v1729, 127
        %v1770 = vpop.permute.xlu0 %1769
        %1771 = vrot.lane.b32.xlu0 %v1730, 127
        %v1772 = vpop.permute.xlu0 %1771
        %v1773 = vsel %vm379, %v1770, %v1772
        %v1774 = vsel %vm379, %v1768, %v1770
        %v1775 = vsel %vm379, %v1772, %v1768
        %1776 = vrot.lane.b32.xlu0 %v1728, 111
        %v1777 = vpop.permute.xlu0 %1776
        %1778 = vrot.lane.b32.xlu0 %v1729, 111
        %v1779 = vpop.permute.xlu0 %1778
        %1780 = vrot.lane.b32.xlu0 %v1730, 111
        %v1781 = vpop.permute.xlu0 %1780
        %v1782 = vsel %vm389, %v1779, %v1781
        %v1783 = vsel %vm389, %v1777, %v1779
        %v1784 = vsel %vm389, %v1781, %v1777
        %1785 = vrot.lane.b32.xlu0 %v1728, 110
        %v1786 = vpop.permute.xlu0 %1785
        %1787 = vrot.lane.b32.xlu0 %v1729, 110
        %v1788 = vpop.permute.xlu0 %1787
        %1789 = vrot.lane.b32.xlu0 %v1730, 110
        %v1790 = vpop.permute.xlu0 %1789
        %v1791 = vsel %vm399, %v1788, %v1790
        %v1792 = vsel %vm399, %v1786, %v1788
        %v1793 = vsel %vm399, %v1790, %v1786
        %1794 = vrot.lane.b32.xlu0 %v1728, 109
        %v1795 = vpop.permute.xlu0 %1794
        %1796 = vrot.lane.b32.xlu0 %v1729, 109
        %v1797 = vpop.permute.xlu0 %1796
        %1798 = vrot.lane.b32.xlu0 %v1730, 109
        %v1799 = vpop.permute.xlu0 %1798
        %v1800 = vsel %vm409, %v1797, %v1799
        %v1801 = vsel %vm409, %v1795, %v1797
        %v1802 = vsel %vm409, %v1799, %v1795
        %v1803 = vstv %s1724
        %v1804 = vmul.f32 %v1803, %v307
        %v1805 = vmul.f32 %v1803, %v308
        %v1806 = vmul.f32 %v1803, %v309
        %1807 = vmatprep.subr.mxu0 0.0
        %1808 = vmatpush1.msra.mxu0 0.0
        %1809 = vmatprep.subr.mxu0 0.0
        %1810 = vmatpush1.msra.mxu0 0.0
        %1811 = vmatprep.subr.mxu0 0.0
        %1812 = vmatpush1.msra.mxu0 0.0
        %1813 = vmatprep.subr.mxu0 0.0
        %1814 = vmatpush1.msra.mxu0 0.0
        %1815 = vmatprep.subr.mxu0 0.0
        %1816 = vmatpush1.msra.mxu0 0.0
        %1817 = vmatprep.subr.mxu0 0.0
        %1818 = vmatpush1.msra.mxu0 0.0
        %1819 = vmatprep.subr.mxu0 0.0
        %1820 = vmatpush1.msra.mxu0 0.0
        %1821 = vmatprep.subr.mxu0 %v1800
        %1822 = vmatpush1.msra.mxu0 %v1801
        %1823 = vmatprep.subr.mxu0 %v1791
        %1824 = vmatpush1.msra.mxu0 %v1792
        %1825 = vmatprep.subr.mxu0 %v1782
        %1826 = vmatpush1.msra.mxu0 %v1783
        %1827 = vmatprep.subr.mxu0 %v1773
        %1828 = vmatpush1.msra.mxu0 %v1774
        %1829 = vmatprep.subr.mxu0 %v1729
        %1830 = vmatpush1.msra.mxu0 %v1728
        %1831 = vmatprep.subr.mxu0 %v1765
        %1832 = vmatpush1.msra.mxu0 %v1766
        %1833 = vmatprep.subr.mxu0 %v1756
        %1834 = vmatpush1.msra.mxu0 %v1757
        %1835 = vmatprep.subr.mxu0 %v1747
        %1836 = vmatpush1.msra.mxu0 %v1748
        %1837 = vmatprep.subr.mxu0 %v1738
        %1838 = vmatpush1.msra.mxu0 %v1739
        %1839 = vmatprep.subr.mxu0 0.0
        %1840 = vmatpush2.msra.mxu0 0.0
        %1841 = vmatprep.subr.mxu0 0.0
        %1842 = vmatpush2.msra.mxu0 0.0
        %1843 = vmatprep.subr.mxu0 0.0
        %1844 = vmatpush2.msra.mxu0 0.0
        %1845 = vmatprep.subr.mxu0 0.0
        %1846 = vmatpush2.msra.mxu0 0.0
        %1847 = vmatprep.subr.mxu0 0.0
        %1848 = vmatpush2.msra.mxu0 0.0
        %1849 = vmatprep.subr.mxu0 0.0
        %1850 = vmatpush2.msra.mxu0 0.0
        %1851 = vmatprep.subr.mxu0 0.0
        %1852 = vmatpush2.msra.mxu0 0.0
        %1853 = vmatprep.subr.mxu0 0.0
        %1854 = vmatpush2.msra.mxu0 0.0
        %1855 = vmatprep.subr.mxu0 0.0
        %1856 = vmatpush2.msra.mxu0 0.0
        %1857 = vmatprep.subr.mxu0 0.0
        %1858 = vmatpush2.msra.mxu0 0.0
        %1859 = vmatprep.subr.mxu0 0.0
        %1860 = vmatpush2.msra.mxu0 0.0
        %1861 = vmatprep.subr.mxu0 0.0
        %1862 = vmatpush2.msra.mxu0 0.0
        %1863 = vmatprep.subr.mxu0 0.0
        %1864 = vmatpush2.msra.mxu0 0.0
        %1865 = vmatprep.subr.mxu0 0.0
        %1866 = vmatpush2.msra.mxu0 0.0
        %1867 = vmatprep.subr.mxu0 0.0
        %1868 = vmatpush2.msra.mxu0 0.0
        %1869 = vmatprep.subr.mxu0 0.0
        %1870 = vmatpush2.msra.mxu0 0.0
        %1871 = vmatprep.mubr.f32.mxu0 0.0
        %1872 = vmatmul.mubr.f32.gmra.mxu0 %v419
        %v1873 = vpop.f32.mrf.mxu0
        %v1874 = vadd.f32 %v1804, %v1873
        %v1875 = vpop.f32.mrf.mxu0
        %v1876 = vadd.f32 %v1805, %v1875
        %1877 = vdwg.mxu0
        %1878 = vmatprep.subr.mxu0 0.0
        %1879 = vmatpush1.msra.mxu0 0.0
        %1880 = vmatprep.subr.mxu0 0.0
        %1881 = vmatpush1.msra.mxu0 0.0
        %1882 = vmatprep.subr.mxu0 0.0
        %1883 = vmatpush1.msra.mxu0 0.0
        %1884 = vmatprep.subr.mxu0 0.0
        %1885 = vmatpush1.msra.mxu0 0.0
        %1886 = vmatprep.subr.mxu0 0.0
        %1887 = vmatpush1.msra.mxu0 0.0
        %1888 = vmatprep.subr.mxu0 0.0
        %1889 = vmatpush1.msra.mxu0 0.0
        %1890 = vmatprep.subr.mxu0 0.0
        %1891 = vmatpush1.msra.mxu0 0.0
        %1892 = vmatprep.subr.mxu0 0.0
        %1893 = vmatpush1.msra.mxu0 %v1802
        %1894 = vmatprep.subr.mxu0 0.0
        %1895 = vmatpush1.msra.mxu0 %v1793
        %1896 = vmatprep.subr.mxu0 0.0
        %1897 = vmatpush1.msra.mxu0 %v1784
        %1898 = vmatprep.subr.mxu0 0.0
        %1899 = vmatpush1.msra.mxu0 %v1775
        %1900 = vmatprep.subr.mxu0 0.0
        %1901 = vmatpush1.msra.mxu0 %v1730
        %1902 = vmatprep.subr.mxu0 0.0
        %1903 = vmatpush1.msra.mxu0 %v1764
        %1904 = vmatprep.subr.mxu0 0.0
        %1905 = vmatpush1.msra.mxu0 %v1755
        %1906 = vmatprep.subr.mxu0 0.0
        %1907 = vmatpush1.msra.mxu0 %v1746
        %1908 = vmatprep.subr.mxu0 0.0
        %1909 = vmatpush1.msra.mxu0 %v1737
        %1910 = vmatprep.subr.mxu0 0.0
        %1911 = vmatpush2.msra.mxu0 0.0
        %1912 = vmatprep.subr.mxu0 0.0
        %1913 = vmatpush2.msra.mxu0 0.0
        %1914 = vmatprep.subr.mxu0 0.0
        %1915 = vmatpush2.msra.mxu0 0.0
        %1916 = vmatprep.subr.mxu0 0.0
        %1917 = vmatpush2.msra.mxu0 0.0
        %1918 = vmatprep.subr.mxu0 0.0
        %1919 = vmatpush2.msra.mxu0 0.0
        %1920 = vmatprep.subr.mxu0 0.0
        %1921 = vmatpush2.msra.mxu0 0.0
        %1922 = vmatprep.subr.mxu0 0.0
        %1923 = vmatpush2.msra.mxu0 0.0
        %1924 = vmatprep.subr.mxu0 0.0
        %1925 = vmatpush2.msra.mxu0 0.0
        %1926 = vmatprep.subr.mxu0 0.0
        %1927 = vmatpush2.msra.mxu0 0.0
        %1928 = vmatprep.subr.mxu0 0.0
        %1929 = vmatpush2.msra.mxu0 0.0
        %1930 = vmatprep.subr.mxu0 0.0
        %1931 = vmatpush2.msra.mxu0 0.0
        %1932 = vmatprep.subr.mxu0 0.0
        %1933 = vmatpush2.msra.mxu0 0.0
        %1934 = vmatprep.subr.mxu0 0.0
        %1935 = vmatpush2.msra.mxu0 0.0
        %1936 = vmatprep.subr.mxu0 0.0
        %1937 = vmatpush2.msra.mxu0 0.0
        %1938 = vmatprep.subr.mxu0 0.0
        %1939 = vmatpush2.msra.mxu0 0.0
        %1940 = vmatprep.subr.mxu0 0.0
        %1941 = vmatpush2.msra.mxu0 0.0
        %1942 = vmatprep.mubr.f32.mxu0 0.0
        %1943 = vmatmul.mubr.f32.gmra.mxu0 %v419
        %v1944 = vpop.f32.mrf.mxu0
        %v1945 = vadd.f32 %v1806, %v1944
        %v1946 = vpop.f32.mrf.mxu0
        %1947 = vdwg.mxu0
        %v1948 = vadd.f32 %v1874, %v565
        %v1949 = vadd.f32 %v1876, %v565
        %v1950 = vadd.f32 %v1945, %v565
        %v1951 = vmax.f32 %v1948, 0.0
        %v1952 = vmax.f32 %v1949, 0.0
        %v1953 = vmax.f32 %v1950, 0.0
        %v1954 = vmul.f32 %v1951, %v577
        %v1955 = vmul.f32 %v1952, %v581
        %v1956 = vmul.f32 %v1953, %v585
        %1957 = vrot.lane.b32.xlu0 %v1954, 19
        %v1958 = vpop.permute.xlu0 %1957
        %1959 = vrot.lane.b32.xlu0 %v1955, 19
        %v1960 = vpop.permute.xlu0 %1959
        %1961 = vrot.lane.b32.xlu0 %v1956, 19
        %v1962 = vpop.permute.xlu0 %1961
        %v1963 = vsel %vm339, %v1960, %v1962
        %v1964 = vsel %vm339, %v1958, %v1960
        %v1965 = vsel %vm339, %v1962, %v1958
        %1966 = vrot.lane.b32.xlu0 %v1954, 18
        %v1967 = vpop.permute.xlu0 %1966
        %1968 = vrot.lane.b32.xlu0 %v1955, 18
        %v1969 = vpop.permute.xlu0 %1968
        %1970 = vrot.lane.b32.xlu0 %v1956, 18
        %v1971 = vpop.permute.xlu0 %1970
        %v1972 = vsel %vm349, %v1969, %v1971
        %v1973 = vsel %vm349, %v1967, %v1969
        %v1974 = vsel %vm349, %v1971, %v1967
        %1975 = vrot.lane.b32.xlu0 %v1954, 17
        %v1976 = vpop.permute.xlu0 %1975
        %1977 = vrot.lane.b32.xlu0 %v1955, 17
        %v1978 = vpop.permute.xlu0 %1977
        %1979 = vrot.lane.b32.xlu0 %v1956, 17
        %v1980 = vpop.permute.xlu0 %1979
        %v1981 = vsel %vm359, %v1978, %v1980
        %v1982 = vsel %vm359, %v1976, %v1978
        %v1983 = vsel %vm359, %v1980, %v1976
        %1984 = vrot.lane.b32.xlu0 %v1954, 1
        %v1985 = vpop.permute.xlu0 %1984
        %1986 = vrot.lane.b32.xlu0 %v1955, 1
        %v1987 = vpop.permute.xlu0 %1986
        %1988 = vrot.lane.b32.xlu0 %v1956, 1
        %v1989 = vpop.permute.xlu0 %1988
        %v1990 = vsel %vm369, %v1987, %v1989
        %v1991 = vsel %vm369, %v1985, %v1987
        %v1992 = vsel %vm369, %v1989, %v1985
        %1993 = vrot.lane.b32.xlu0 %v1954, 127
        %v1994 = vpop.permute.xlu0 %1993
        %1995 = vrot.lane.b32.xlu0 %v1955, 127
        %v1996 = vpop.permute.xlu0 %1995
        %1997 = vrot.lane.b32.xlu0 %v1956, 127
        %v1998 = vpop.permute.xlu0 %1997
        %v1999 = vsel %vm379, %v1996, %v1998
        %v2000 = vsel %vm379, %v1994, %v1996
        %v2001 = vsel %vm379, %v1998, %v1994
        %2002 = vrot.lane.b32.xlu0 %v1954, 111
        %v2003 = vpop.permute.xlu0 %2002
        %2004 = vrot.lane.b32.xlu0 %v1955, 111
        %v2005 = vpop.permute.xlu0 %2004
        %2006 = vrot.lane.b32.xlu0 %v1956, 111
        %v2007 = vpop.permute.xlu0 %2006
        %v2008 = vsel %vm389, %v2005, %v2007
        %v2009 = vsel %vm389, %v2003, %v2005
        %v2010 = vsel %vm389, %v2007, %v2003
        %2011 = vrot.lane.b32.xlu0 %v1954, 110
        %v2012 = vpop.permute.xlu0 %2011
        %2013 = vrot.lane.b32.xlu0 %v1955, 110
        %v2014 = vpop.permute.xlu0 %2013
        %2015 = vrot.lane.b32.xlu0 %v1956, 110
        %v2016 = vpop.permute.xlu0 %2015
        %v2017 = vsel %vm399, %v2014, %v2016
        %v2018 = vsel %vm399, %v2012, %v2014
        %v2019 = vsel %vm399, %v2016, %v2012
        %2020 = vrot.lane.b32.xlu0 %v1954, 109
        %v2021 = vpop.permute.xlu0 %2020
        %2022 = vrot.lane.b32.xlu0 %v1955, 109
        %v2023 = vpop.permute.xlu0 %2022
        %2024 = vrot.lane.b32.xlu0 %v1956, 109
        %v2025 = vpop.permute.xlu0 %2024
        %v2026 = vsel %vm409, %v2023, %v2025
        %v2027 = vsel %vm409, %v2021, %v2023
        %v2028 = vsel %vm409, %v2025, %v2021
        %v2029 = vmul.f32 %v1803, %v310
        %v2030 = vmul.f32 %v1803, %v311
        %v2031 = vmul.f32 %v1803, %v312
        %2032 = vmatprep.subr.mxu0 0.0
        %2033 = vmatpush1.msra.mxu0 0.0
        %2034 = vmatprep.subr.mxu0 0.0
        %2035 = vmatpush1.msra.mxu0 0.0
        %2036 = vmatprep.subr.mxu0 0.0
        %2037 = vmatpush1.msra.mxu0 0.0
        %2038 = vmatprep.subr.mxu0 0.0
        %2039 = vmatpush1.msra.mxu0 0.0
        %2040 = vmatprep.subr.mxu0 0.0
        %2041 = vmatpush1.msra.mxu0 0.0
        %2042 = vmatprep.subr.mxu0 0.0
        %2043 = vmatpush1.msra.mxu0 0.0
        %2044 = vmatprep.subr.mxu0 0.0
        %2045 = vmatpush1.msra.mxu0 0.0
        %2046 = vmatprep.subr.mxu0 %v2026
        %2047 = vmatpush1.msra.mxu0 %v2027
        %2048 = vmatprep.subr.mxu0 %v2017
        %2049 = vmatpush1.msra.mxu0 %v2018
        %2050 = vmatprep.subr.mxu0 %v2008
        %2051 = vmatpush1.msra.mxu0 %v2009
        %2052 = vmatprep.subr.mxu0 %v1999
        %2053 = vmatpush1.msra.mxu0 %v2000
        %2054 = vmatprep.subr.mxu0 %v1955
        %2055 = vmatpush1.msra.mxu0 %v1954
        %2056 = vmatprep.subr.mxu0 %v1991
        %2057 = vmatpush1.msra.mxu0 %v1992
        %2058 = vmatprep.subr.mxu0 %v1982
        %2059 = vmatpush1.msra.mxu0 %v1983
        %2060 = vmatprep.subr.mxu0 %v1973
        %2061 = vmatpush1.msra.mxu0 %v1974
        %2062 = vmatprep.subr.mxu0 %v1964
        %2063 = vmatpush1.msra.mxu0 %v1965
        %2064 = vmatprep.subr.mxu0 0.0
        %2065 = vmatpush2.msra.mxu0 0.0
        %2066 = vmatprep.subr.mxu0 0.0
        %2067 = vmatpush2.msra.mxu0 0.0
        %2068 = vmatprep.subr.mxu0 0.0
        %2069 = vmatpush2.msra.mxu0 0.0
        %2070 = vmatprep.subr.mxu0 0.0
        %2071 = vmatpush2.msra.mxu0 0.0
        %2072 = vmatprep.subr.mxu0 0.0
        %2073 = vmatpush2.msra.mxu0 0.0
        %2074 = vmatprep.subr.mxu0 0.0
        %2075 = vmatpush2.msra.mxu0 0.0
        %2076 = vmatprep.subr.mxu0 0.0
        %2077 = vmatpush2.msra.mxu0 0.0
        %2078 = vmatprep.subr.mxu0 0.0
        %2079 = vmatpush2.msra.mxu0 0.0
        %2080 = vmatprep.subr.mxu0 0.0
        %2081 = vmatpush2.msra.mxu0 0.0
        %2082 = vmatprep.subr.mxu0 0.0
        %2083 = vmatpush2.msra.mxu0 0.0
        %2084 = vmatprep.subr.mxu0 0.0
        %2085 = vmatpush2.msra.mxu0 0.0
        %2086 = vmatprep.subr.mxu0 0.0
        %2087 = vmatpush2.msra.mxu0 0.0
        %2088 = vmatprep.subr.mxu0 0.0
        %2089 = vmatpush2.msra.mxu0 0.0
        %2090 = vmatprep.subr.mxu0 0.0
        %2091 = vmatpush2.msra.mxu0 0.0
        %2092 = vmatprep.subr.mxu0 0.0
        %2093 = vmatpush2.msra.mxu0 0.0
        %2094 = vmatprep.subr.mxu0 0.0
        %2095 = vmatpush2.msra.mxu0 0.0
        %2096 = vmatprep.mubr.f32.mxu0 0.0
        %2097 = vmatmul.mubr.f32.gmra.mxu0 %v668
        %v2098 = vpop.f32.mrf.mxu0
        %v2099 = vadd.f32 %v2029, %v2098
        %v2100 = vpop.f32.mrf.mxu0
        %v2101 = vadd.f32 %v2030, %v2100
        %2102 = vdwg.mxu0
        %2103 = vmatprep.subr.mxu0 0.0
        %2104 = vmatpush1.msra.mxu0 0.0
        %2105 = vmatprep.subr.mxu0 0.0
        %2106 = vmatpush1.msra.mxu0 0.0
        %2107 = vmatprep.subr.mxu0 0.0
        %2108 = vmatpush1.msra.mxu0 0.0
        %2109 = vmatprep.subr.mxu0 0.0
        %2110 = vmatpush1.msra.mxu0 0.0
        %2111 = vmatprep.subr.mxu0 0.0
        %2112 = vmatpush1.msra.mxu0 0.0
        %2113 = vmatprep.subr.mxu0 0.0
        %2114 = vmatpush1.msra.mxu0 0.0
        %2115 = vmatprep.subr.mxu0 0.0
        %2116 = vmatpush1.msra.mxu0 0.0
        %2117 = vmatprep.subr.mxu0 0.0
        %2118 = vmatpush1.msra.mxu0 %v2028
        %2119 = vmatprep.subr.mxu0 0.0
        %2120 = vmatpush1.msra.mxu0 %v2019
        %2121 = vmatprep.subr.mxu0 0.0
        %2122 = vmatpush1.msra.mxu0 %v2010
        %2123 = vmatprep.subr.mxu0 0.0
        %2124 = vmatpush1.msra.mxu0 %v2001
        %2125 = vmatprep.subr.mxu0 0.0
        %2126 = vmatpush1.msra.mxu0 %v1956
        %2127 = vmatprep.subr.mxu0 0.0
        %2128 = vmatpush1.msra.mxu0 %v1990
        %2129 = vmatprep.subr.mxu0 0.0
        %2130 = vmatpush1.msra.mxu0 %v1981
        %2131 = vmatprep.subr.mxu0 0.0
        %2132 = vmatpush1.msra.mxu0 %v1972
        %2133 = vmatprep.subr.mxu0 0.0
        %2134 = vmatpush1.msra.mxu0 %v1963
        %2135 = vmatprep.subr.mxu0 0.0
        %2136 = vmatpush2.msra.mxu0 0.0
        %2137 = vmatprep.subr.mxu0 0.0
        %2138 = vmatpush2.msra.mxu0 0.0
        %2139 = vmatprep.subr.mxu0 0.0
        %2140 = vmatpush2.msra.mxu0 0.0
        %2141 = vmatprep.subr.mxu0 0.0
        %2142 = vmatpush2.msra.mxu0 0.0
        %2143 = vmatprep.subr.mxu0 0.0
        %2144 = vmatpush2.msra.mxu0 0.0
        %2145 = vmatprep.subr.mxu0 0.0
        %2146 = vmatpush2.msra.mxu0 0.0
        %2147 = vmatprep.subr.mxu0 0.0
        %2148 = vmatpush2.msra.mxu0 0.0
        %2149 = vmatprep.subr.mxu0 0.0
        %2150 = vmatpush2.msra.mxu0 0.0
        %2151 = vmatprep.subr.mxu0 0.0
        %2152 = vmatpush2.msra.mxu0 0.0
        %2153 = vmatprep.subr.mxu0 0.0
        %2154 = vmatpush2.msra.mxu0 0.0
        %2155 = vmatprep.subr.mxu0 0.0
        %2156 = vmatpush2.msra.mxu0 0.0
        %2157 = vmatprep.subr.mxu0 0.0
        %2158 = vmatpush2.msra.mxu0 0.0
        %2159 = vmatprep.subr.mxu0 0.0
        %2160 = vmatpush2.msra.mxu0 0.0
        %2161 = vmatprep.subr.mxu0 0.0
        %2162 = vmatpush2.msra.mxu0 0.0
        %2163 = vmatprep.subr.mxu0 0.0
        %2164 = vmatpush2.msra.mxu0 0.0
        %2165 = vmatprep.subr.mxu0 0.0
        %2166 = vmatpush2.msra.mxu0 0.0
        %2167 = vmatprep.mubr.f32.mxu0 0.0
        %2168 = vmatmul.mubr.f32.gmra.mxu0 %v668
        %v2169 = vpop.f32.mrf.mxu0
        %v2170 = vadd.f32 %v2031, %v2169
        %v2171 = vpop.f32.mrf.mxu0
        %2172 = vdwg.mxu0
        %v2173 = vadd.f32 %v2099, %v814
        %v2174 = vadd.f32 %v2101, %v814
        %v2175 = vadd.f32 %v2170, %v814
        %v2176 = vmul.f32 %v2173, %v577
        %v2177 = vmul.f32 %v2174, %v581
        %v2178 = vmul.f32 %v2175, %v585
        %v2179 = vmul.f32 %v1274, 2.0
        %v2180 = vmul.f32 %v1275, 2.0
        %v2181 = vmul.f32 %v1276, 2.0
        %v2182 = vadd.f32 %v819, %v2179
        %v2183 = vadd.f32 %v820, %v2180
        %v2184 = vadd.f32 %v821, %v2181
        %v2185 = vmul.f32 %v1721, 2.0
        %v2186 = vmul.f32 %v1722, 2.0
        %v2187 = vmul.f32 %v1723, 2.0
        %v2188 = vadd.f32 %v2182, %v2185
        %v2189 = vadd.f32 %v2183, %v2186
        %v2190 = vadd.f32 %v2184, %v2187
        %v2191 = vadd.f32 %v2188, %v2176
        %v2192 = vadd.f32 %v2189, %v2177
        %v2193 = vadd.f32 %v2190, %v2178
        %v2194 = vmul.f32 %v2191, 0.020833334
        %v2195 = vmul.f32 %v2192, 0.020833334
        %v2196 = vmul.f32 %v2193, 0.020833334
        %v2197 = vadd.f32 %v326, %v2194
        %v2198 = vadd.f32 %v327, %v2195
        %v2199 = vadd.f32 %v328, %v2196
      $region57: #{ode_block_forward.1} parent=51 // loop_footer
        %s325 = sadd.s32 1, %s321
      $region58: #{ode_block_forward.1} parent=51 // loop_footer_branch
        %320 = sbr.rel target = $region54
      $region59: #{ode_block_forward.1} parent=51 // loop_exit
        _
      %2200 = vst [vmem:[%s305] sm:$0xff] %v326
      %2201 = vst [vmem:[%s305 + $0x8] sm:$0xff] %v327
      %2202 = vst [vmem:[%s305 + $0x10] sm:$0xff] %v328
      %p2203 = scmp.lt.s32.totalorder %s19, 1
      %s2204 = scalar_select %p2203, %s19, 1
      %s2205 = smul.addr %s2204, 3
      %s2206 = smul.addr %s2205, 8
      %s2207 = scalar_lea.vmem %s8, %s2206
      // Predicated region
      $region60: #{ode_block_forward.1} parent=51 // pred_check
        %p2208 = pneg %p210
      $region61: #{ode_block_forward.1} parent=51 // pred_check_branch
        %2210 = sbr.rel (%p2208) target = $region63
      $region62: #{ode_block_forward.1} parent=51 // pred_region
        _
      $region63: #{ode_block_forward.1} parent=51 // pred_fallthru
        _
    $region52: #{ode_block_forward.1} parent=5 // pred_fallthru
      _
    %p2211 = scmp.le.s32.totalorder 2, %s14
    // Predicated region
    $region64: #{ode_block_forward.1} parent=5 // pred_check
      %p2212 = pneg %p2211
    $region65: #{ode_block_forward.1} parent=5 // pred_check_branch
      %2214 = sbr.rel (%p2212) target = $region67
    $region66: #{ode_block_forward.1} parent=5 // pred_region
      %s2215 = ssub.s32 %s14, 2
      // Predicated region
      $region68: #{ode_block_forward.1} parent=66 // pred_check
        %p2216 = pneg %p216
      $region69: #{ode_block_forward.1} parent=66 // pred_check_branch
        %2218 = sbr.rel (%p2216) target = $region71
      $region70: #{ode_block_forward.1} parent=66 // pred_region
        %p2219 = scmp.lt.s32.totalorder %s20, 1
        %s2220 = scalar_select %p2219, %s20, 1
        %s2221 = smul.addr %s2220, 3
        %s2222 = smul.addr %s2221, 8
        %s2223 = scalar_lea.vmem %s8, %s2222
      $region71: #{ode_block_forward.1} parent=66 // pred_fallthru
        _
    $region67: #{ode_block_forward.1} parent=5 // pred_fallthru
      _
  $region6: #{ode_block_forward.1} parent=0 // loop_footer
    %s18 = sadd.s32 1, %s14
  $region7: #{ode_block_forward.1} parent=0 // loop_footer_branch
    %13 = sbr.rel target = $region3
  $region8: #{ode_block_forward.1} parent=0 // loop_exit
    _

</llo_original>
